<compile_context>
chip_gen: v7x
topology: tpu7x:2x2x1
jax: 0.10.0
libtpu: 0.0.40
codegen_flags: <defaults>
</compile_context>

<pallas_src>
import functools

import jax
import jax.numpy as jnp
from jax.experimental import pallas as pl
from jax.experimental.pallas import tpu as pltpu


# ----------------------------------------------------------------------------
# Plain-JAX glue: FPS / knn / gathers (data-dependent indexing, tiny sizes).
# TODO(synk): the FPS loop, top_k and the two index_points gathers stay in
# XLA; pulling the gathers in-kernel (scalar-prefetch id_knn + manual DMA from
# F / vertices kept in pl.ANY) would remove a few launches but adds ~48 tiny
# DMAs — left as future work.
# ----------------------------------------------------------------------------
def farthest_point_sample(xyz, npoint):
    """Deterministic FPS (stochastic=False). xyz: [B, N, 3] -> [B, npoint]."""
    B, N, _ = xyz.shape
    distance = jnp.full((B, N), 1e10, dtype=xyz.dtype)
    farthest = jnp.zeros((B,), dtype=jnp.int32)
    batch_idx = jnp.arange(B)
    centroids = []
    for _ in range(npoint):
        centroids.append(farthest)
        centroid = xyz[batch_idx, farthest][:, None, :]          # [B, 1, 3]
        dist = jnp.sum((xyz - centroid) ** 2, axis=-1)           # [B, N]
        distance = jnp.minimum(distance, dist)
        farthest = jnp.argmax(distance, axis=-1).astype(jnp.int32)
    return jnp.stack(centroids, axis=1)                          # [B, npoint]


def index_points(points, idx):
    """points: [B, N, C], idx: [B, ...] -> [B, ..., C]."""
    B = points.shape[0]
    bidx = jnp.arange(B).reshape((B,) + (1,) * (idx.ndim - 1))
    return points[bidx, idx]


def square_distance(src, dst):
    d = -2.0 * jnp.einsum("bnc,bmc->bnm", src, dst)
    d = d + jnp.sum(src ** 2, axis=-1)[:, :, None]
    d = d + jnp.sum(dst ** 2, axis=-1)[:, None, :]
    return d                                                     # [B, N, M]


def knn(nsample, xyz, new_xyz):
    dist = square_distance(xyz, new_xyz)                         # [B, N, S]
    dist_t = jnp.transpose(dist, (0, 2, 1))                      # [B, S, N]
    _, idx = jax.lax.top_k(-dist_t, nsample)                     # smallest k
    return idx                                                   # [B, S, k]


# ----------------------------------------------------------------------------
# Fused Pallas kernel: MLP + softmax/max/argmax/one-hot + weighted reductions.
# Single grid step; everything lives in VMEM for the whole body.
# ----------------------------------------------------------------------------
def fused_view_select_kernel(fg_ref, vg_ref, w1_ref, b1_ref, w2_ref, b2_ref,
                             fscore_ref, fnew_ref, vnew_ref, x_buf):
    B, S, K, D = fg_ref.shape
    C = fscore_ref.shape[-1]
    BK = B * K

    # ---- X[b*K+ki, s*D+d] = Fg[b, s, ki, d]  (== torch F1, rows = (b, ki)) --
    # Assembled with static-slice stores into a VMEM scratch: no in-kernel
    # transpose / sublane reshape, and it feeds ONE matmul per Linear.
    for b in range(B):
        for s in range(S):
            x_buf[b * K:(b + 1) * K, s * D:(s + 1) * D] = fg_ref[b, s]
    x = x_buf[...].astype(jnp.bfloat16)                          # [BK, S*D]

    # ---- classifier MLP: one MXU matmul per Linear over all (b, ki) rows ---
    h = jnp.dot(x, w1_ref[...],
                preferred_element_type=jnp.float32) + b1_ref[...]      # [BK, H]
    h = jnp.maximum(h, 0.2 * h)                                        # LeakyReLU(0.2)
    y = jnp.dot(h.astype(jnp.bfloat16), w2_ref[...],
                preferred_element_type=jnp.float32) + b2_ref[...]      # [BK, S*C]

    # ---- F_score[b, s, ki, c] = y[b*K+ki, s*C+c]; one coalesced store ------
    y_s = [y[:, s * C:(s + 1) * C] for s in range(S)]                  # S x [BK, C]
    fscore_ref[...] = jnp.stack(
        [jnp.stack([y_s[s][b * K:(b + 1) * K, :] for s in range(S)], axis=0)
         for b in range(B)], axis=0)                                   # [B, S, K, C]

    # ---- softmax over the sampled-view axis (torch dim=-3), all rows at once
    m = y_s[0]
    for s in range(1, S):
        m = jnp.maximum(m, y_s[s])
    e_s = [jnp.exp(ys - m) for ys in y_s]
    z = e_s[0]
    for s in range(1, S):
        z = z + e_s[s]
    inv_z = pl.reciprocal(z, approx=False)    # exact: keeps argmax tie-stable
    q_s = [jnp.max(e * inv_z, axis=-1, keepdims=True) for e in e_s]    # S x [BK, 1]

    # ---- first-occurrence argmax over k -> one-hot (per batch element) -----
    row = jax.lax.broadcasted_iota(jnp.int32, (K, 1), 0)               # hoisted
    onehot_b = []
    for b in range(B):
        onehot_s = []
        for s in range(S):
            q = q_s[s][b * K:(b + 1) * K, :]                           # [K, 1]
            maxv = jnp.max(q, axis=0, keepdims=True)                   # [1, 1]
            first = jnp.min(jnp.where(q == maxv, row, K),
                            axis=0, keepdims=True)                     # [1, 1]
            onehot_s.append((row == first).astype(jnp.float32))        # [K, 1]
        onehot_b.append(jnp.stack(onehot_s, axis=0))                   # [S, K, 1]
    onehot = jnp.stack(onehot_b, axis=0)                               # [B, S, K, 1]

    # ---- one-hot weighted reductions over k: one shot, one store each ------
    fnew_ref[...] = jnp.sum(onehot * fg_ref[...], axis=2)              # [B, S, D]
    vnew_ref[...] = jnp.sum(onehot * vg_ref[...], axis=2)              # [B, S, 3]


def fused_view_select(Fg, Vg, w1, b1, w2, b2):
    """Fg:[B,S,K,D] f32, Vg:[B,S,K,3] f32, w1:[S*D,H] bf16, b1:[1,H] f32,
    w2:[H,S*C] bf16, b2:[1,S*C] f32 -> (F_score[B,S,K,C], F_new[B,S,D],
    vertices_new[B,S,3]), all f32."""
    B, S, K, D = Fg.shape
    SD, H = w1.shape
    SC = w2.shape[-1]
    C = SC // S
    return pl.pallas_call(
        fused_view_select_kernel,
        out_shape=(
            jax.ShapeDtypeStruct((B, S, K, C), jnp.float32),
            jax.ShapeDtypeStruct((B, S, D), jnp.float32),
            jax.ShapeDtypeStruct((B, S, 3), jnp.float32),
        ),
        grid=(1,),
        in_specs=[
            pl.BlockSpec((B, S, K, D), lambda i: (0, 0, 0, 0)),
            pl.BlockSpec((B, S, K, 3), lambda i: (0, 0, 0, 0)),
            pl.BlockSpec((SD, H), lambda i: (0, 0)),
            pl.BlockSpec((1, H), lambda i: (0, 0)),
            pl.BlockSpec((H, SC), lambda i: (0, 0)),
            pl.BlockSpec((1, SC), lambda i: (0, 0)),
        ],
        out_specs=(
            pl.BlockSpec((B, S, K, C), lambda i: (0, 0, 0, 0)),
            pl.BlockSpec((B, S, D), lambda i: (0, 0, 0)),
            pl.BlockSpec((B, S, 3), lambda i: (0, 0, 0)),
        ),
        scratch_shapes=[pltpu.VMEM((B * K, SD), jnp.float32)],
        compiler_params=pltpu.CompilerParams(
            dimension_semantics=("arbitrary",)),  # don't shard tiny work on v7x
    )(Fg, Vg, w1, b1, w2, b2)


# ----------------------------------------------------------------------------
# Parameter preparation (done once, outside the hot path).
# Weights stored as [in, out] (y = x @ W + b); merged (not per-view-blocked),
# bf16 for the MXU operands, f32 biases.
# ----------------------------------------------------------------------------
def prepare_params(w1, b1, w2, b2):
    w1m = w1.astype(jnp.bfloat16)                      # [S*D, H]
    b1m = b1.reshape(1, -1).astype(jnp.float32)        # [1, H]
    w2m = w2.astype(jnp.bfloat16)                      # [H, S*C]
    b2m = b2.reshape(1, -1).astype(jnp.float32)        # [1, S*C]
    return w1m, b1m, w2m, b2m


# ----------------------------------------------------------------------------
# Full forward pass of View_selector (eval mode).
# ----------------------------------------------------------------------------
@functools.partial(jax.jit, static_argnames=("k", "s_views"))
def view_selector_forward(F, vertices, params, *, k, s_views):
    w1m, b1m, w2m, b2m = params

    # Data-dependent front-end (gather / top-k) stays in plain JAX (see TODO).
    idx = farthest_point_sample(vertices, s_views)               # [B, s]
    vertices1 = index_points(vertices, idx)                      # [B, s, 3]
    id_knn = knn(k, vertices, vertices1)                         # [B, s, k]
    Fg = index_points(F, id_knn)                                 # [B, s, k, d]
    Vg = index_points(vertices, id_knn)                          # [B, s, k, 3]

    F_score, F_new, vertices_new = fused_view_select(Fg, Vg, w1m, b1m, w2m, b2m)
    return F_new, F_score, vertices_new


if __name__ == "__main__":
    # Small shapes consistent with the module. k = 4 (one_hot(.., 4) hard-code).
    B, N, dim = 2, 16, 64
    s_views, k, nclasses = 3, 4, 8
    assert k == 4, "View_selector hard-codes one_hot(.., 4), so k must be 4"

    key = jax.random.PRNGKey(0)
    kf, kv, k1, k2, k3, k4 = jax.random.split(key, 6)
    F = jax.random.normal(kf, (B, N, dim), jnp.float32)
    vertices = jax.random.normal(kv, (B, N, 3), jnp.float32)

    Din = dim * s_views
    H = 256 * s_views
    Dout = nclasses * s_views
    # Deterministic synthetic parameters (stored as [in, out]; y = x @ W + b).
    w1 = jax.random.normal(k1, (Din, H), jnp.float32) * 0.02
    b1 = jax.random.normal(k2, (1, H), jnp.float32) * 0.02
    w2 = jax.random.normal(k3, (H, Dout), jnp.float32) * 0.02
    b2 = jax.random.normal(k4, (1, Dout), jnp.float32) * 0.02

    params = prepare_params(w1, b1, w2, b2)

    F_new, F_score, v_new = view_selector_forward(
        F, vertices, params, k=k, s_views=s_views)
    jax.block_until_ready((F_new, F_score, v_new))

    assert F_new.shape == (B, s_views, dim)
    assert F_score.shape == (B, s_views, k, nclasses)
    assert v_new.shape == (B, s_views, 3)
    print("KERNEL_OK")
</pallas_src>

<mosaic_0001>
module attributes {stable_mosaic.version = 11 : i64} {
  func.func @fused_view_select_kernel(%arg0: i32, %arg1: memref<2x3x4x64xf32, #tpu.memory_space<vmem>>, %arg2: memref<2x3x4x3xf32, #tpu.memory_space<vmem>>, %arg3: memref<192x768xbf16, #tpu.memory_space<vmem>>, %arg4: memref<1x768xf32, #tpu.memory_space<vmem>>, %arg5: memref<768x24xbf16, #tpu.memory_space<vmem>>, %arg6: memref<1x24xf32, #tpu.memory_space<vmem>>, %arg7: memref<2x3x4x8xf32, #tpu.memory_space<vmem>>, %arg8: memref<2x3x64xf32, #tpu.memory_space<vmem>>, %arg9: memref<2x3x3xf32, #tpu.memory_space<vmem>>, %arg10: memref<8x192xf32, #tpu.memory_space<vmem>>) attributes {dimension_semantics = [#tpu.dimension_semantics<arbitrary>], iteration_bounds = array<i64: 1>, scalar_prefetch = 0 : i64, scratch_operands = 1 : i64, tpu.core_type = #tpu.core_type<tc>, window_params = [{pipeline_mode = #tpu.pipeline_mode<synchronous>, transform_indices = @transform_0, window_bounds = array<i64: 2, 3, 4, 64>}, {pipeline_mode = #tpu.pipeline_mode<synchronous>, transform_indices = @transform_1, window_bounds = array<i64: 2, 3, 4, 3>}, {pipeline_mode = #tpu.pipeline_mode<synchronous>, transform_indices = @transform_2, window_bounds = array<i64: 192, 768>}, {pipeline_mode = #tpu.pipeline_mode<synchronous>, transform_indices = @transform_3, window_bounds = array<i64: 1, 768>}, {pipeline_mode = #tpu.pipeline_mode<synchronous>, transform_indices = @transform_4, window_bounds = array<i64: 768, 24>}, {pipeline_mode = #tpu.pipeline_mode<synchronous>, transform_indices = @transform_5, window_bounds = array<i64: 1, 24>}, {pipeline_mode = #tpu.pipeline_mode<synchronous>, transform_indices = @transform_6, window_bounds = array<i64: 2, 3, 4, 8>}, {pipeline_mode = #tpu.pipeline_mode<synchronous>, transform_indices = @transform_7, window_bounds = array<i64: 2, 3, 64>}, {pipeline_mode = #tpu.pipeline_mode<synchronous>, transform_indices = @transform_8, window_bounds = array<i64: 2, 3, 3>}]} {
    %c0 = arith.constant 0 : index
    %c0_0 = arith.constant 0 : index
    %c0_1 = arith.constant 0 : index
    %c0_2 = arith.constant 0 : index
    %0 = vector.load %arg1[%c0, %c0_0, %c0_1, %c0_2] : memref<2x3x4x64xf32, #tpu.memory_space<vmem>>, vector<1x1x4x64xf32>
    %1 = vector.shape_cast %0 : vector<1x1x4x64xf32> to vector<4x64xf32>
    %c0_3 = arith.constant 0 : index
    %c0_4 = arith.constant 0 : index
    %2 = vector.load %arg10[%c0_3, %c0_4] : memref<8x192xf32, #tpu.memory_space<vmem>>, vector<4x64xf32>
    tpu.vector_store %arg10[%c0_3, %c0_4], %1 {strides = array<i32>} : memref<8x192xf32, #tpu.memory_space<vmem>>, vector<4x64xf32>,
    %c0_5 = arith.constant 0 : index
    %c1 = arith.constant 1 : index
    %c0_6 = arith.constant 0 : index
    %c0_7 = arith.constant 0 : index
    %3 = vector.load %arg1[%c0_5, %c1, %c0_6, %c0_7] : memref<2x3x4x64xf32, #tpu.memory_space<vmem>>, vector<1x1x4x64xf32>
    %4 = vector.shape_cast %3 : vector<1x1x4x64xf32> to vector<4x64xf32>
    %c0_8 = arith.constant 0 : index
    %c64 = arith.constant 64 : index
    %5 = vector.load %arg10[%c0_8, %c64] : memref<8x192xf32, #tpu.memory_space<vmem>>, vector<4x64xf32>
    tpu.vector_store %arg10[%c0_8, %c64], %4 {strides = array<i32>} : memref<8x192xf32, #tpu.memory_space<vmem>>, vector<4x64xf32>,
    %c0_9 = arith.constant 0 : index
    %c2 = arith.constant 2 : index
    %c0_10 = arith.constant 0 : index
    %c0_11 = arith.constant 0 : index
    %6 = vector.load %arg1[%c0_9, %c2, %c0_10, %c0_11] : memref<2x3x4x64xf32, #tpu.memory_space<vmem>>, vector<1x1x4x64xf32>
    %7 = vector.shape_cast %6 : vector<1x1x4x64xf32> to vector<4x64xf32>
    %c0_12 = arith.constant 0 : index
    %c128 = arith.constant 128 : index
    %8 = vector.load %arg10[%c0_12, %c128] : memref<8x192xf32, #tpu.memory_space<vmem>>, vector<4x64xf32>
    tpu.vector_store %arg10[%c0_12, %c128], %7 {strides = array<i32>} : memref<8x192xf32, #tpu.memory_space<vmem>>, vector<4x64xf32>,
    %c1_13 = arith.constant 1 : index
    %c0_14 = arith.constant 0 : index
    %c0_15 = arith.constant 0 : index
    %c0_16 = arith.constant 0 : index
    %9 = vector.load %arg1[%c1_13, %c0_14, %c0_15, %c0_16] : memref<2x3x4x64xf32, #tpu.memory_space<vmem>>, vector<1x1x4x64xf32>
    %10 = vector.shape_cast %9 : vector<1x1x4x64xf32> to vector<4x64xf32>
    %c4 = arith.constant 4 : index
    %c0_17 = arith.constant 0 : index
    %11 = vector.load %arg10[%c4, %c0_17] : memref<8x192xf32, #tpu.memory_space<vmem>>, vector<4x64xf32>
    tpu.vector_store %arg10[%c4, %c0_17], %10 {strides = array<i32>} : memref<8x192xf32, #tpu.memory_space<vmem>>, vector<4x64xf32>,
    %c1_18 = arith.constant 1 : index
    %c1_19 = arith.constant 1 : index
    %c0_20 = arith.constant 0 : index
    %c0_21 = arith.constant 0 : index
    %12 = vector.load %arg1[%c1_18, %c1_19, %c0_20, %c0_21] : memref<2x3x4x64xf32, #tpu.memory_space<vmem>>, vector<1x1x4x64xf32>
    %13 = vector.shape_cast %12 : vector<1x1x4x64xf32> to vector<4x64xf32>
    %c4_22 = arith.constant 4 : index
    %c64_23 = arith.constant 64 : index
    %14 = vector.load %arg10[%c4_22, %c64_23] : memref<8x192xf32, #tpu.memory_space<vmem>>, vector<4x64xf32>
    tpu.vector_store %arg10[%c4_22, %c64_23], %13 {strides = array<i32>} : memref<8x192xf32, #tpu.memory_space<vmem>>, vector<4x64xf32>,
    %c1_24 = arith.constant 1 : index
    %c2_25 = arith.constant 2 : index
    %c0_26 = arith.constant 0 : index
    %c0_27 = arith.constant 0 : index
    %15 = vector.load %arg1[%c1_24, %c2_25, %c0_26, %c0_27] : memref<2x3x4x64xf32, #tpu.memory_space<vmem>>, vector<1x1x4x64xf32>
    %16 = vector.shape_cast %15 : vector<1x1x4x64xf32> to vector<4x64xf32>
    %c4_28 = arith.constant 4 : index
    %c128_29 = arith.constant 128 : index
    %17 = vector.load %arg10[%c4_28, %c128_29] : memref<8x192xf32, #tpu.memory_space<vmem>>, vector<4x64xf32>
    tpu.vector_store %arg10[%c4_28, %c128_29], %16 {strides = array<i32>} : memref<8x192xf32, #tpu.memory_space<vmem>>, vector<4x64xf32>,
    %c0_30 = arith.constant 0 : index
    %c0_31 = arith.constant 0 : index
    %18 = vector.load %arg10[%c0_30, %c0_31] : memref<8x192xf32, #tpu.memory_space<vmem>>, vector<8x192xf32>
    %19 = arith.truncf %18 : vector<8x192xf32> to vector<8x192xbf16>
    %c0_32 = arith.constant 0 : index
    %c0_33 = arith.constant 0 : index
    %20 = vector.load %arg3[%c0_32, %c0_33] : memref<192x768xbf16, #tpu.memory_space<vmem>>, vector<192x768xbf16>
    %cst = arith.constant dense<0.000000e+00> : vector<8x768xf32>
    %21 = tpu.matmul %19, %20, %cst {dimension_numbers = #tpu.dot_dimension_numbers<[1], [0], [0], [1], [0, 0, 1, 1], [], []>} : vector<8x192xbf16>, vector<192x768xbf16>, vector<8x768xf32> -> vector<8x768xf32>
    %c0_34 = arith.constant 0 : index
    %c0_35 = arith.constant 0 : index
    %22 = vector.load %arg4[%c0_34, %c0_35] : memref<1x768xf32, #tpu.memory_space<vmem>>, vector<1x768xf32>
    %23 = vector.broadcast %22 : vector<1x768xf32> to vector<8x768xf32>
    %24 = arith.addf %21, %23 : vector<8x768xf32>
    %cst_36 = arith.constant 2.000000e-01 : f32
    %25 = vector.broadcast %cst_36 : f32 to vector<8x768xf32>
    %26 = arith.mulf %25, %24 : vector<8x768xf32>
    %27 = arith.maximumf %24, %26 : vector<8x768xf32>
    %28 = arith.truncf %27 : vector<8x768xf32> to vector<8x768xbf16>
    %c0_37 = arith.constant 0 : index
    %c0_38 = arith.constant 0 : index
    %29 = vector.load %arg5[%c0_37, %c0_38] : memref<768x24xbf16, #tpu.memory_space<vmem>>, vector<768x24xbf16>
    %cst_39 = arith.constant dense<0.000000e+00> : vector<8x24xf32>
    %30 = tpu.matmul %28, %29, %cst_39 {dimension_numbers = #tpu.dot_dimension_numbers<[1], [0], [0], [1], [0, 0, 1, 1], [], []>} : vector<8x768xbf16>, vector<768x24xbf16>, vector<8x24xf32> -> vector<8x24xf32>
    %c0_40 = arith.constant 0 : index
    %c0_41 = arith.constant 0 : index
    %31 = vector.load %arg6[%c0_40, %c0_41] : memref<1x24xf32, #tpu.memory_space<vmem>>, vector<1x24xf32>
    %32 = vector.broadcast %31 : vector<1x24xf32> to vector<8x24xf32>
    %33 = arith.addf %30, %32 : vector<8x24xf32>
    %34 = vector.extract_strided_slice %33 {offsets = [0, 0], sizes = [8, 8], strides = [1, 1]} : vector<8x24xf32> to vector<8x8xf32>
    %35 = vector.extract_strided_slice %33 {offsets = [0, 8], sizes = [8, 8], strides = [1, 1]} : vector<8x24xf32> to vector<8x8xf32>
    %36 = vector.extract_strided_slice %33 {offsets = [0, 16], sizes = [8, 8], strides = [1, 1]} : vector<8x24xf32> to vector<8x8xf32>
    %37 = vector.extract_strided_slice %34 {offsets = [0, 0], sizes = [4, 8], strides = [1, 1]} : vector<8x8xf32> to vector<4x8xf32>
    %38 = vector.extract_strided_slice %35 {offsets = [0, 0], sizes = [4, 8], strides = [1, 1]} : vector<8x8xf32> to vector<4x8xf32>
    %39 = vector.extract_strided_slice %36 {offsets = [0, 0], sizes = [4, 8], strides = [1, 1]} : vector<8x8xf32> to vector<4x8xf32>
    %40 = vector.shape_cast %37 : vector<4x8xf32> to vector<1x4x8xf32>
    %41 = vector.shape_cast %38 : vector<4x8xf32> to vector<1x4x8xf32>
    %42 = vector.shape_cast %39 : vector<4x8xf32> to vector<1x4x8xf32>
    %43 = tpu.concatenate %40, %41, %42 in 0 : vector<1x4x8xf32>, vector<1x4x8xf32>, vector<1x4x8xf32> -> vector<3x4x8xf32>
    %44 = vector.extract_strided_slice %34 {offsets = [4, 0], sizes = [4, 8], strides = [1, 1]} : vector<8x8xf32> to vector<4x8xf32>
    %45 = vector.extract_strided_slice %35 {offsets = [4, 0], sizes = [4, 8], strides = [1, 1]} : vector<8x8xf32> to vector<4x8xf32>
    %46 = vector.extract_strided_slice %36 {offsets = [4, 0], sizes = [4, 8], strides = [1, 1]} : vector<8x8xf32> to vector<4x8xf32>
    %47 = vector.shape_cast %44 : vector<4x8xf32> to vector<1x4x8xf32>
    %48 = vector.shape_cast %45 : vector<4x8xf32> to vector<1x4x8xf32>
    %49 = vector.shape_cast %46 : vector<4x8xf32> to vector<1x4x8xf32>
    %50 = tpu.concatenate %47, %48, %49 in 0 : vector<1x4x8xf32>, vector<1x4x8xf32>, vector<1x4x8xf32> -> vector<3x4x8xf32>
    %51 = vector.shape_cast %43 : vector<3x4x8xf32> to vector<1x3x4x8xf32>
    %52 = vector.shape_cast %50 : vector<3x4x8xf32> to vector<1x3x4x8xf32>
    %53 = tpu.concatenate %51, %52 in 0 : vector<1x3x4x8xf32>, vector<1x3x4x8xf32> -> vector<2x3x4x8xf32>
    %c0_42 = arith.constant 0 : index
    %c0_43 = arith.constant 0 : index
    %c0_44 = arith.constant 0 : index
    %c0_45 = arith.constant 0 : index
    %54 = vector.load %arg7[%c0_42, %c0_43, %c0_44, %c0_45] : memref<2x3x4x8xf32, #tpu.memory_space<vmem>>, vector<2x3x4x8xf32>
    tpu.vector_store %arg7[%c0_42, %c0_43, %c0_44, %c0_45], %53 {strides = array<i32>} : memref<2x3x4x8xf32, #tpu.memory_space<vmem>>, vector<2x3x4x8xf32>,
    %55 = arith.maximumf %34, %35 : vector<8x8xf32>
    %56 = arith.maximumf %55, %36 : vector<8x8xf32>
    %57 = arith.subf %34, %56 : vector<8x8xf32>
    %58 = math.exp %57 : vector<8x8xf32>
    %59 = arith.subf %35, %56 : vector<8x8xf32>
    %60 = math.exp %59 : vector<8x8xf32>
    %61 = arith.subf %36, %56 : vector<8x8xf32>
    %62 = math.exp %61 : vector<8x8xf32>
    %63 = arith.addf %58, %60 : vector<8x8xf32>
    %64 = arith.addf %63, %62 : vector<8x8xf32>
    %65 = tpu.reciprocal %64 : vector<8x8xf32> -> vector<8x8xf32>
    %66 = arith.mulf %58, %65 : vector<8x8xf32>
    %cst_46 = arith.constant dense<0xFF800000> : vector<8xf32>
    %67 = vector.multi_reduction <maximumf>, %66, %cst_46 [1] : vector<8x8xf32> to vector<8xf32>
    %68 = vector.shape_cast %67 : vector<8xf32> to vector<8x1xf32>
    %69 = arith.mulf %60, %65 : vector<8x8xf32>
    %cst_47 = arith.constant dense<0xFF800000> : vector<8xf32>
    %70 = vector.multi_reduction <maximumf>, %69, %cst_47 [1] : vector<8x8xf32> to vector<8xf32>
    %71 = vector.shape_cast %70 : vector<8xf32> to vector<8x1xf32>
    %72 = arith.mulf %62, %65 : vector<8x8xf32>
    %cst_48 = arith.constant dense<0xFF800000> : vector<8xf32>
    %73 = vector.multi_reduction <maximumf>, %72, %cst_48 [1] : vector<8x8xf32> to vector<8xf32>
    %74 = vector.shape_cast %73 : vector<8xf32> to vector<8x1xf32>
    %75 = tpu.iota {dimensions = array<i32: 0>} : vector<4x1xi32>
    %76 = vector.extract_strided_slice %68 {offsets = [0, 0], sizes = [4, 1], strides = [1, 1]} : vector<8x1xf32> to vector<4x1xf32>
    %cst_49 = arith.constant dense<0xFF800000> : vector<1xf32>
    %77 = vector.multi_reduction <maximumf>, %76, %cst_49 [0] : vector<4x1xf32> to vector<1xf32>
    %78 = vector.shape_cast %77 : vector<1xf32> to vector<1x1xf32>
    %79 = vector.broadcast %78 : vector<1x1xf32> to vector<4x1xf32>
    %80 = arith.cmpf oeq, %76, %79 : vector<4x1xf32>
    %c4_i32 = arith.constant 4 : i32
    %81 = vector.broadcast %c4_i32 : i32 to vector<4x1xi32>
    %82 = arith.select %80, %75, %81 : vector<4x1xi1>, vector<4x1xi32>
    %cst_50 = arith.constant dense<2147483647> : vector<1xi32>
    %83 = vector.multi_reduction <minsi>, %82, %cst_50 [0] : vector<4x1xi32> to vector<1xi32>
    %84 = vector.shape_cast %83 : vector<1xi32> to vector<1x1xi32>
    %85 = vector.broadcast %84 : vector<1x1xi32> to vector<4x1xi32>
    %86 = arith.cmpi eq, %75, %85 : vector<4x1xi32>
    %87 = arith.extui %86 : vector<4x1xi1> to vector<4x1xi32>
    %88 = arith.sitofp %87 : vector<4x1xi32> to vector<4x1xf32>
    %89 = vector.extract_strided_slice %71 {offsets = [0, 0], sizes = [4, 1], strides = [1, 1]} : vector<8x1xf32> to vector<4x1xf32>
    %cst_51 = arith.constant dense<0xFF800000> : vector<1xf32>
    %90 = vector.multi_reduction <maximumf>, %89, %cst_51 [0] : vector<4x1xf32> to vector<1xf32>
    %91 = vector.shape_cast %90 : vector<1xf32> to vector<1x1xf32>
    %92 = vector.broadcast %91 : vector<1x1xf32> to vector<4x1xf32>
    %93 = arith.cmpf oeq, %89, %92 : vector<4x1xf32>
    %c4_i32_52 = arith.constant 4 : i32
    %94 = vector.broadcast %c4_i32_52 : i32 to vector<4x1xi32>
    %95 = arith.select %93, %75, %94 : vector<4x1xi1>, vector<4x1xi32>
    %cst_53 = arith.constant dense<2147483647> : vector<1xi32>
    %96 = vector.multi_reduction <minsi>, %95, %cst_53 [0] : vector<4x1xi32> to vector<1xi32>
    %97 = vector.shape_cast %96 : vector<1xi32> to vector<1x1xi32>
    %98 = vector.broadcast %97 : vector<1x1xi32> to vector<4x1xi32>
    %99 = arith.cmpi eq, %75, %98 : vector<4x1xi32>
    %100 = arith.extui %99 : vector<4x1xi1> to vector<4x1xi32>
    %101 = arith.sitofp %100 : vector<4x1xi32> to vector<4x1xf32>
    %102 = vector.extract_strided_slice %74 {offsets = [0, 0], sizes = [4, 1], strides = [1, 1]} : vector<8x1xf32> to vector<4x1xf32>
    %cst_54 = arith.constant dense<0xFF800000> : vector<1xf32>
    %103 = vector.multi_reduction <maximumf>, %102, %cst_54 [0] : vector<4x1xf32> to vector<1xf32>
    %104 = vector.shape_cast %103 : vector<1xf32> to vector<1x1xf32>
    %105 = vector.broadcast %104 : vector<1x1xf32> to vector<4x1xf32>
    %106 = arith.cmpf oeq, %102, %105 : vector<4x1xf32>
    %c4_i32_55 = arith.constant 4 : i32
    %107 = vector.broadcast %c4_i32_55 : i32 to vector<4x1xi32>
    %108 = arith.select %106, %75, %107 : vector<4x1xi1>, vector<4x1xi32>
    %cst_56 = arith.constant dense<2147483647> : vector<1xi32>
    %109 = vector.multi_reduction <minsi>, %108, %cst_56 [0] : vector<4x1xi32> to vector<1xi32>
    %110 = vector.shape_cast %109 : vector<1xi32> to vector<1x1xi32>
    %111 = vector.broadcast %110 : vector<1x1xi32> to vector<4x1xi32>
    %112 = arith.cmpi eq, %75, %111 : vector<4x1xi32>
    %113 = arith.extui %112 : vector<4x1xi1> to vector<4x1xi32>
    %114 = arith.sitofp %113 : vector<4x1xi32> to vector<4x1xf32>
    %115 = vector.shape_cast %88 : vector<4x1xf32> to vector<1x4x1xf32>
    %116 = vector.shape_cast %101 : vector<4x1xf32> to vector<1x4x1xf32>
    %117 = vector.shape_cast %114 : vector<4x1xf32> to vector<1x4x1xf32>
    %118 = tpu.concatenate %115, %116, %117 in 0 : vector<1x4x1xf32>, vector<1x4x1xf32>, vector<1x4x1xf32> -> vector<3x4x1xf32>
    %119 = vector.extract_strided_slice %68 {offsets = [4, 0], sizes = [4, 1], strides = [1, 1]} : vector<8x1xf32> to vector<4x1xf32>
    %cst_57 = arith.constant dense<0xFF800000> : vector<1xf32>
    %120 = vector.multi_reduction <maximumf>, %119, %cst_57 [0] : vector<4x1xf32> to vector<1xf32>
    %121 = vector.shape_cast %120 : vector<1xf32> to vector<1x1xf32>
    %122 = vector.broadcast %121 : vector<1x1xf32> to vector<4x1xf32>
    %123 = arith.cmpf oeq, %119, %122 : vector<4x1xf32>
    %c4_i32_58 = arith.constant 4 : i32
    %124 = vector.broadcast %c4_i32_58 : i32 to vector<4x1xi32>
    %125 = arith.select %123, %75, %124 : vector<4x1xi1>, vector<4x1xi32>
    %cst_59 = arith.constant dense<2147483647> : vector<1xi32>
    %126 = vector.multi_reduction <minsi>, %125, %cst_59 [0] : vector<4x1xi32> to vector<1xi32>
    %127 = vector.shape_cast %126 : vector<1xi32> to vector<1x1xi32>
    %128 = vector.broadcast %127 : vector<1x1xi32> to vector<4x1xi32>
    %129 = arith.cmpi eq, %75, %128 : vector<4x1xi32>
    %130 = arith.extui %129 : vector<4x1xi1> to vector<4x1xi32>
    %131 = arith.sitofp %130 : vector<4x1xi32> to vector<4x1xf32>
    %132 = vector.extract_strided_slice %71 {offsets = [4, 0], sizes = [4, 1], strides = [1, 1]} : vector<8x1xf32> to vector<4x1xf32>
    %cst_60 = arith.constant dense<0xFF800000> : vector<1xf32>
    %133 = vector.multi_reduction <maximumf>, %132, %cst_60 [0] : vector<4x1xf32> to vector<1xf32>
    %134 = vector.shape_cast %133 : vector<1xf32> to vector<1x1xf32>
    %135 = vector.broadcast %134 : vector<1x1xf32> to vector<4x1xf32>
    %136 = arith.cmpf oeq, %132, %135 : vector<4x1xf32>
    %c4_i32_61 = arith.constant 4 : i32
    %137 = vector.broadcast %c4_i32_61 : i32 to vector<4x1xi32>
    %138 = arith.select %136, %75, %137 : vector<4x1xi1>, vector<4x1xi32>
    %cst_62 = arith.constant dense<2147483647> : vector<1xi32>
    %139 = vector.multi_reduction <minsi>, %138, %cst_62 [0] : vector<4x1xi32> to vector<1xi32>
    %140 = vector.shape_cast %139 : vector<1xi32> to vector<1x1xi32>
    %141 = vector.broadcast %140 : vector<1x1xi32> to vector<4x1xi32>
    %142 = arith.cmpi eq, %75, %141 : vector<4x1xi32>
    %143 = arith.extui %142 : vector<4x1xi1> to vector<4x1xi32>
    %144 = arith.sitofp %143 : vector<4x1xi32> to vector<4x1xf32>
    %145 = vector.extract_strided_slice %74 {offsets = [4, 0], sizes = [4, 1], strides = [1, 1]} : vector<8x1xf32> to vector<4x1xf32>
    %cst_63 = arith.constant dense<0xFF800000> : vector<1xf32>
    %146 = vector.multi_reduction <maximumf>, %145, %cst_63 [0] : vector<4x1xf32> to vector<1xf32>
    %147 = vector.shape_cast %146 : vector<1xf32> to vector<1x1xf32>
    %148 = vector.broadcast %147 : vector<1x1xf32> to vector<4x1xf32>
    %149 = arith.cmpf oeq, %145, %148 : vector<4x1xf32>
    %c4_i32_64 = arith.constant 4 : i32
    %150 = vector.broadcast %c4_i32_64 : i32 to vector<4x1xi32>
    %151 = arith.select %149, %75, %150 : vector<4x1xi1>, vector<4x1xi32>
    %cst_65 = arith.constant dense<2147483647> : vector<1xi32>
    %152 = vector.multi_reduction <minsi>, %151, %cst_65 [0] : vector<4x1xi32> to vector<1xi32>
    %153 = vector.shape_cast %152 : vector<1xi32> to vector<1x1xi32>
    %154 = vector.broadcast %153 : vector<1x1xi32> to vector<4x1xi32>
    %155 = arith.cmpi eq, %75, %154 : vector<4x1xi32>
    %156 = arith.extui %155 : vector<4x1xi1> to vector<4x1xi32>
    %157 = arith.sitofp %156 : vector<4x1xi32> to vector<4x1xf32>
    %158 = vector.shape_cast %131 : vector<4x1xf32> to vector<1x4x1xf32>
    %159 = vector.shape_cast %144 : vector<4x1xf32> to vector<1x4x1xf32>
    %160 = vector.shape_cast %157 : vector<4x1xf32> to vector<1x4x1xf32>
    %161 = tpu.concatenate %158, %159, %160 in 0 : vector<1x4x1xf32>, vector<1x4x1xf32>, vector<1x4x1xf32> -> vector<3x4x1xf32>
    %162 = vector.shape_cast %118 : vector<3x4x1xf32> to vector<1x3x4x1xf32>
    %163 = vector.shape_cast %161 : vector<3x4x1xf32> to vector<1x3x4x1xf32>
    %164 = tpu.concatenate %162, %163 in 0 : vector<1x3x4x1xf32>, vector<1x3x4x1xf32> -> vector<2x3x4x1xf32>
    %c0_66 = arith.constant 0 : index
    %c0_67 = arith.constant 0 : index
    %c0_68 = arith.constant 0 : index
    %c0_69 = arith.constant 0 : index
    %165 = vector.load %arg1[%c0_66, %c0_67, %c0_68, %c0_69] : memref<2x3x4x64xf32, #tpu.memory_space<vmem>>, vector<2x3x4x64xf32>
    %166 = vector.broadcast %164 : vector<2x3x4x1xf32> to vector<2x3x4x64xf32>
    %167 = arith.mulf %166, %165 : vector<2x3x4x64xf32>
    %cst_70 = arith.constant dense<0.000000e+00> : vector<2x3x64xf32>
    %168 = vector.multi_reduction <add>, %167, %cst_70 [2] : vector<2x3x4x64xf32> to vector<2x3x64xf32>
    %c0_71 = arith.constant 0 : index
    %c0_72 = arith.constant 0 : index
    %c0_73 = arith.constant 0 : index
    %169 = vector.load %arg8[%c0_71, %c0_72, %c0_73] : memref<2x3x64xf32, #tpu.memory_space<vmem>>, vector<2x3x64xf32>
    tpu.vector_store %arg8[%c0_71, %c0_72, %c0_73], %168 {strides = array<i32>} : memref<2x3x64xf32, #tpu.memory_space<vmem>>, vector<2x3x64xf32>,
    %c0_74 = arith.constant 0 : index
    %c0_75 = arith.constant 0 : index
    %c0_76 = arith.constant 0 : index
    %c0_77 = arith.constant 0 : index
    %170 = vector.load %arg2[%c0_74, %c0_75, %c0_76, %c0_77] : memref<2x3x4x3xf32, #tpu.memory_space<vmem>>, vector<2x3x4x3xf32>
    %171 = vector.broadcast %164 : vector<2x3x4x1xf32> to vector<2x3x4x3xf32>
    %172 = arith.mulf %171, %170 : vector<2x3x4x3xf32>
    %cst_78 = arith.constant dense<0.000000e+00> : vector<2x3x3xf32>
    %173 = vector.multi_reduction <add>, %172, %cst_78 [2] : vector<2x3x4x3xf32> to vector<2x3x3xf32>
    %c0_79 = arith.constant 0 : index
    %c0_80 = arith.constant 0 : index
    %c0_81 = arith.constant 0 : index
    %174 = vector.load %arg9[%c0_79, %c0_80, %c0_81] : memref<2x3x3xf32, #tpu.memory_space<vmem>>, vector<2x3x3xf32>
    tpu.vector_store %arg9[%c0_79, %c0_80, %c0_81], %173 {strides = array<i32>} : memref<2x3x3xf32, #tpu.memory_space<vmem>>, vector<2x3x3xf32>,
    return
  }
  func.func @transform_0(%arg0: i32) -> (i32, i32, i32, i32) {
    %c0_i32 = arith.constant 0 : i32
    %c0_i32_0 = arith.constant 0 : i32
    %c0_i32_1 = arith.constant 0 : i32
    %c0_i32_2 = arith.constant 0 : i32
    %c0_i32_3 = arith.constant 0 : i32
    return %c0_i32, %c0_i32_0, %c0_i32_1, %c0_i32_2 : i32, i32, i32, i32
  }
  func.func @transform_1(%arg0: i32) -> (i32, i32, i32, i32) {
    %c0_i32 = arith.constant 0 : i32
    %c0_i32_0 = arith.constant 0 : i32
    %c0_i32_1 = arith.constant 0 : i32
    %c0_i32_2 = arith.constant 0 : i32
    %c0_i32_3 = arith.constant 0 : i32
    return %c0_i32, %c0_i32_0, %c0_i32_1, %c0_i32_2 : i32, i32, i32, i32
  }
  func.func @transform_2(%arg0: i32) -> (i32, i32) {
    %c0_i32 = arith.constant 0 : i32
    %c0_i32_0 = arith.constant 0 : i32
    %c0_i32_1 = arith.constant 0 : i32
    return %c0_i32, %c0_i32_0 : i32, i32
  }
  func.func @transform_3(%arg0: i32) -> (i32, i32) {
    %c0_i32 = arith.constant 0 : i32
    %c0_i32_0 = arith.constant 0 : i32
    %c0_i32_1 = arith.constant 0 : i32
    return %c0_i32, %c0_i32_0 : i32, i32
  }
  func.func @transform_4(%arg0: i32) -> (i32, i32) {
    %c0_i32 = arith.constant 0 : i32
    %c0_i32_0 = arith.constant 0 : i32
    %c0_i32_1 = arith.constant 0 : i32
    return %c0_i32, %c0_i32_0 : i32, i32
  }
  func.func @transform_5(%arg0: i32) -> (i32, i32) {
    %c0_i32 = arith.constant 0 : i32
    %c0_i32_0 = arith.constant 0 : i32
    %c0_i32_1 = arith.constant 0 : i32
    return %c0_i32, %c0_i32_0 : i32, i32
  }
  func.func @transform_6(%arg0: i32) -> (i32, i32, i32, i32) {
    %c0_i32 = arith.constant 0 : i32
    %c0_i32_0 = arith.constant 0 : i32
    %c0_i32_1 = arith.constant 0 : i32
    %c0_i32_2 = arith.constant 0 : i32
    %c0_i32_3 = arith.constant 0 : i32
    return %c0_i32, %c0_i32_0, %c0_i32_1, %c0_i32_2 : i32, i32, i32, i32
  }
  func.func @transform_7(%arg0: i32) -> (i32, i32, i32) {
    %c0_i32 = arith.constant 0 : i32
    %c0_i32_0 = arith.constant 0 : i32
    %c0_i32_1 = arith.constant 0 : i32
    %c0_i32_2 = arith.constant 0 : i32
    return %c0_i32, %c0_i32_0, %c0_i32_1 : i32, i32, i32
  }
  func.func @transform_8(%arg0: i32) -> (i32, i32, i32) {
    %c0_i32 = arith.constant 0 : i32
    %c0_i32_0 = arith.constant 0 : i32
    %c0_i32_1 = arith.constant 0 : i32
    %c0_i32_2 = arith.constant 0 : i32
    return %c0_i32, %c0_i32_0, %c0_i32_1 : i32, i32, i32
  }
}

</mosaic_0001>

<llo_original>
// kernel: view_selector_forward.1
$region0: #{view_selector_forward.1}
  #allocation0 [shape = 'u32[]', space=smem, size = 0x4, offset = 0x4, fixed_abs, tag = 'smem constant byte address 0x4 - core index']
  #allocation1 [shape = 'u32[144,128]{1,0:T(1,128)}', space=vmem, size = 0x12000, scoped, tag = 'internal scratch']
  #allocation2 [shape = 'f32[8,192]{1,0:T(8,128)}', space=vmem, size = 0x2000, scoped, tag = 'scratch operand']
  %s0 = inlined_call_operand.vmem [shape: f32[2,3,4,64], index: 0, kind: input, shape index: {}]
  %s1 = inlined_call_operand.vmem [shape: f32[2,3,4,3], index: 1, kind: input, shape index: {}]
  %s2 = inlined_call_operand.vmem [shape: bf16[192,768], index: 2, kind: input, shape index: {}]
  %s3 = inlined_call_operand.vmem [shape: f32[1,768], index: 3, kind: input, shape index: {}]
  %s4 = inlined_call_operand.vmem [shape: bf16[768,24], index: 4, kind: input, shape index: {}]
  %s5 = inlined_call_operand.vmem [shape: f32[1,24], index: 5, kind: input, shape index: {}]
  %s6 = inlined_call_operand.hbm [shape: f32[2,3,4,8], index: 6, kind: output, shape index: {0}]
  %s7 = inlined_call_operand.vmem [shape: f32[2,3,64], index: 7, kind: output, shape index: {1}]
  %s8 = inlined_call_operand.vmem [shape: f32[2,3,3], index: 8, kind: output, shape index: {2}]
  %9 = xla_tuple %s6, %s7, %s8
  %s10 = sld [smem:[#allocation0]]
  $region50: #{view_selector_forward.1} parent=0
    _
  %s12 = ssub.s32 1, %s10
  %s13 = scalar_select 0, %s12, %s10
  $region1: #{view_selector_forward.1} parent=0
    #allocation3 [shape = 'u8[12288]{0}', space=vmem, size = 0x3000, scoped, tag = 'output window, operand 0, single buffered']
    #allocation4 [shape = 's32[1]{0}', space=sflag, size = 0x4, scoped, tag = 'scoped memory for view_selector_forward.1']
    %14 = vsyncpa [#allocation4], 0
    // Predicated region
    $region2: #{view_selector_forward.1} parent=1 // pred_check
      _
    $region3: #{view_selector_forward.1} parent=1 // pred_check_branch
      %16 = sbr.rel (0) target = $region5
    $region4: #{view_selector_forward.1} parent=1 // pred_region
      _
    $region5: #{view_selector_forward.1} parent=1 // pred_fallthru
      _
    // Predicated region
    $region6: #{view_selector_forward.1} parent=1 // pred_check
      _
    $region7: #{view_selector_forward.1} parent=1 // pred_check_branch
      %18 = sbr.rel (0) target = $region9
    $region8: #{view_selector_forward.1} parent=1 // pred_region
      _
    $region9: #{view_selector_forward.1} parent=1 // pred_fallthru
      _
    // Predicated region
    $region10: #{view_selector_forward.1} parent=1 // pred_check
      _
    $region11: #{view_selector_forward.1} parent=1 // pred_check_branch
      %20 = sbr.rel (0) target = $region13
    $region12: #{view_selector_forward.1} parent=1 // pred_region
      _
    $region13: #{view_selector_forward.1} parent=1 // pred_fallthru
      _
    // Predicated region
    $region14: #{view_selector_forward.1} parent=1 // pred_check
      _
    $region15: #{view_selector_forward.1} parent=1 // pred_check_branch
      %22 = sbr.rel (0) target = $region17
    $region16: #{view_selector_forward.1} parent=1 // pred_region
      _
    $region17: #{view_selector_forward.1} parent=1 // pred_fallthru
      _
    // Predicated region
    $region18: #{view_selector_forward.1} parent=1 // pred_check
      _
    $region19: #{view_selector_forward.1} parent=1 // pred_check_branch
      %24 = sbr.rel (0) target = $region21
    $region20: #{view_selector_forward.1} parent=1 // pred_region
      _
    $region21: #{view_selector_forward.1} parent=1 // pred_fallthru
      _
    // Predicated region
    $region22: #{view_selector_forward.1} parent=1 // pred_check
      _
    $region23: #{view_selector_forward.1} parent=1 // pred_check_branch
      %26 = sbr.rel (0) target = $region25
    $region24: #{view_selector_forward.1} parent=1 // pred_region
      _
    $region25: #{view_selector_forward.1} parent=1 // pred_fallthru
      _
    %v28 = vld [vmem:[%s0] sm:$0xf]
    %vm29 = vcmask 519168
    %30 = vst.msk [vmem:[#allocation2] sm:$0xf] %vm29, %v28
    %s31 = scalar_lea.vmem %s0, 4
    %v32 = vld [vmem:[%s31] sm:$0xf]
    %34 = vrot.lane.b32.xlu0 %v32, 64
    %v35 = vpop.permute.xlu0 %34
    %vm37 = vcmask 1043968
    %38 = vst.msk [vmem:[#allocation2] sm:$0xf] %vm37, %v35
    %s39 = scalar_lea.vmem %s0, 8
    %v40 = vld [vmem:[%s39] sm:$0xf]
    %41 = vst.msk [vmem:[#allocation2 + $0x8] sm:$0xf] %vm29, %v40
    %s42 = scalar_lea.vmem %s0, 12
    %v43 = vld [vmem:[%s42] sm:$0xf]
    %v45 = vrot.slane %v43, 4
    %vm47 = vcmask 523268
    %48 = vst.msk [vmem:[#allocation2] sm:$0xf0] %vm47, %v45
    %s49 = scalar_lea.vmem %s0, 16
    %v50 = vld [vmem:[%s49] sm:$0xf]
    %v52 = vrot.slane %v50, 4
    %53 = vrot.lane.b32.xlu0 %v52, 64
    %v54 = vpop.permute.xlu0 %53
    %vm56 = vcmask 1048068
    %57 = vst.msk [vmem:[#allocation2] sm:$0xf0] %vm56, %v54
    %s58 = scalar_lea.vmem %s0, 20
    %v59 = vld [vmem:[%s58] sm:$0xf]
    %v61 = vrot.slane %v59, 4
    %63 = vst.msk [vmem:[#allocation2 + $0x8] sm:$0xf0] %vm47, %v61
    %v64 = vld [vmem:[#allocation2] sm:$0xff]
    %v65 = vld [vmem:[#allocation2 + $0x8] sm:$0xff]
    %v66 = vpack.c.bf16 %v64, %v64
    %v67 = vpack.c.bf16 %v65, %v65
    %v68 = vld [vmem:[%s2] sm:$0xff]
    %v69 = vld [vmem:[%s2 + $0x8] sm:$0xff]
    %v70 = vld [vmem:[%s2 + $0x10] sm:$0xff]
    %v71 = vld [vmem:[%s2 + $0x18] sm:$0xff]
    %v72 = vld [vmem:[%s2 + $0x20] sm:$0xff]
    %v73 = vld [vmem:[%s2 + $0x28] sm:$0xff]
    %v74 = vld [vmem:[%s2 + $0x30] sm:$0xff]
    %v75 = vld [vmem:[%s2 + $0x38] sm:$0xff]
    %v76 = vld [vmem:[%s2 + $0x40] sm:$0xff]
    %v77 = vld [vmem:[%s2 + $0x48] sm:$0xff]
    %v78 = vld [vmem:[%s2 + $0x50] sm:$0xff]
    %v79 = vld [vmem:[%s2 + $0x58] sm:$0xff]
    %v80 = vld [vmem:[%s2 + $0x60] sm:$0xff]
    %v81 = vld [vmem:[%s2 + $0x68] sm:$0xff]
    %v82 = vld [vmem:[%s2 + $0x70] sm:$0xff]
    %v83 = vld [vmem:[%s2 + $0x78] sm:$0xff]
    %v84 = vld [vmem:[%s2 + $0x80] sm:$0xff]
    %v85 = vld [vmem:[%s2 + $0x88] sm:$0xff]
    %v86 = vld [vmem:[%s2 + $0x90] sm:$0xff]
    %v87 = vld [vmem:[%s2 + $0x98] sm:$0xff]
    %v88 = vld [vmem:[%s2 + $0xa0] sm:$0xff]
    %v89 = vld [vmem:[%s2 + $0xa8] sm:$0xff]
    %v90 = vld [vmem:[%s2 + $0xb0] sm:$0xff]
    %v91 = vld [vmem:[%s2 + $0xb8] sm:$0xff]
    %v92 = vld [vmem:[%s2 + $0xc0] sm:$0xff]
    %v93 = vld [vmem:[%s2 + $0xc8] sm:$0xff]
    %v94 = vld [vmem:[%s2 + $0xd0] sm:$0xff]
    %v95 = vld [vmem:[%s2 + $0xd8] sm:$0xff]
    %v96 = vld [vmem:[%s2 + $0xe0] sm:$0xff]
    %v97 = vld [vmem:[%s2 + $0xe8] sm:$0xff]
    %v98 = vld [vmem:[%s2 + $0xf0] sm:$0xff]
    %v99 = vld [vmem:[%s2 + $0xf8] sm:$0xff]
    %v100 = vld [vmem:[%s2 + $0x100] sm:$0xff]
    %v101 = vld [vmem:[%s2 + $0x108] sm:$0xff]
    %v102 = vld [vmem:[%s2 + $0x110] sm:$0xff]
    %v103 = vld [vmem:[%s2 + $0x118] sm:$0xff]
    %v104 = vld [vmem:[%s2 + $0x120] sm:$0xff]
    %v105 = vld [vmem:[%s2 + $0x128] sm:$0xff]
    %v106 = vld [vmem:[%s2 + $0x130] sm:$0xff]
    %v107 = vld [vmem:[%s2 + $0x138] sm:$0xff]
    %v108 = vld [vmem:[%s2 + $0x140] sm:$0xff]
    %v109 = vld [vmem:[%s2 + $0x148] sm:$0xff]
    %v110 = vld [vmem:[%s2 + $0x150] sm:$0xff]
    %v111 = vld [vmem:[%s2 + $0x158] sm:$0xff]
    %v112 = vld [vmem:[%s2 + $0x160] sm:$0xff]
    %v113 = vld [vmem:[%s2 + $0x168] sm:$0xff]
    %v114 = vld [vmem:[%s2 + $0x170] sm:$0xff]
    %v115 = vld [vmem:[%s2 + $0x178] sm:$0xff]
    %v116 = vld [vmem:[%s2 + $0x180] sm:$0xff]
    %v117 = vld [vmem:[%s2 + $0x188] sm:$0xff]
    %v118 = vld [vmem:[%s2 + $0x190] sm:$0xff]
    %v119 = vld [vmem:[%s2 + $0x198] sm:$0xff]
    %v120 = vld [vmem:[%s2 + $0x1a0] sm:$0xff]
    %v121 = vld [vmem:[%s2 + $0x1a8] sm:$0xff]
    %v122 = vld [vmem:[%s2 + $0x1b0] sm:$0xff]
    %v123 = vld [vmem:[%s2 + $0x1b8] sm:$0xff]
    %v124 = vld [vmem:[%s2 + $0x1c0] sm:$0xff]
    %v125 = vld [vmem:[%s2 + $0x1c8] sm:$0xff]
    %v126 = vld [vmem:[%s2 + $0x1d0] sm:$0xff]
    %v127 = vld [vmem:[%s2 + $0x1d8] sm:$0xff]
    %v128 = vld [vmem:[%s2 + $0x1e0] sm:$0xff]
    %v129 = vld [vmem:[%s2 + $0x1e8] sm:$0xff]
    %v130 = vld [vmem:[%s2 + $0x1f0] sm:$0xff]
    %v131 = vld [vmem:[%s2 + $0x1f8] sm:$0xff]
    %v132 = vld [vmem:[%s2 + $0x200] sm:$0xff]
    %v133 = vld [vmem:[%s2 + $0x208] sm:$0xff]
    %v134 = vld [vmem:[%s2 + $0x210] sm:$0xff]
    %v135 = vld [vmem:[%s2 + $0x218] sm:$0xff]
    %v136 = vld [vmem:[%s2 + $0x220] sm:$0xff]
    %v137 = vld [vmem:[%s2 + $0x228] sm:$0xff]
    %v138 = vld [vmem:[%s2 + $0x230] sm:$0xff]
    %v139 = vld [vmem:[%s2 + $0x238] sm:$0xff]
    %v140 = vld [vmem:[%s3] sm:$0x3f]
    %v142 = vlaneseq
    %v143 = vshrl.u32 %v142, 7
    %v144 = vsub.s32 0, %v143
    %v145 = vrot.slane %v140, %v144
    %v146 = vlaneseq
    %v147 = vshrl.u32 %v146, 7
    %v148 = vsub.s32 1, %v147
    %v149 = vrot.slane %v140, %v148
    %v150 = vlaneseq
    %v151 = vshrl.u32 %v150, 7
    %v152 = vsub.s32 2, %v151
    %v153 = vrot.slane %v140, %v152
    %v154 = vlaneseq
    %v155 = vshrl.u32 %v154, 7
    %v156 = vsub.s32 3, %v155
    %v157 = vrot.slane %v140, %v156
    %v158 = vlaneseq
    %v159 = vshrl.u32 %v158, 7
    %v160 = vsub.s32 4, %v159
    %v161 = vrot.slane %v140, %v160
    %v162 = vlaneseq
    %v163 = vshrl.u32 %v162, 7
    %v164 = vsub.s32 5, %v163
    %v165 = vrot.slane %v140, %v164
    %v244 = vunpack.c.l.b16 %v68
    %v245 = vunpack.c.h.b16 %v68
    %v246 = vunpack.c.l.b16 %v69
    %v247 = vunpack.c.h.b16 %v69
    %v248 = vunpack.c.l.b16 %v70
    %v249 = vunpack.c.h.b16 %v70
    %v250 = vunpack.c.l.b16 %v71
    %v251 = vunpack.c.h.b16 %v71
    %v252 = vunpack.c.l.b16 %v72
    %v253 = vunpack.c.h.b16 %v72
    %v254 = vunpack.c.l.b16 %v73
    %v255 = vunpack.c.h.b16 %v73
    %v256 = vunpack.c.l.b16 %v74
    %v257 = vunpack.c.h.b16 %v74
    %v258 = vunpack.c.l.b16 %v75
    %v259 = vunpack.c.h.b16 %v75
    %v260 = vunpack.c.l.b16 %v76
    %v261 = vunpack.c.h.b16 %v76
    %v262 = vunpack.c.l.b16 %v77
    %v263 = vunpack.c.h.b16 %v77
    %v264 = vunpack.c.l.b16 %v78
    %v265 = vunpack.c.h.b16 %v78
    %v266 = vunpack.c.l.b16 %v79
    %v267 = vunpack.c.h.b16 %v79
    %v268 = vunpack.c.l.b16 %v80
    %v269 = vunpack.c.h.b16 %v80
    %v270 = vunpack.c.l.b16 %v81
    %v271 = vunpack.c.h.b16 %v81
    %v272 = vunpack.c.l.b16 %v82
    %v273 = vunpack.c.h.b16 %v82
    %v274 = vunpack.c.l.b16 %v83
    %v275 = vunpack.c.h.b16 %v83
    %v276 = vunpack.c.l.b16 %v84
    %v277 = vunpack.c.h.b16 %v84
    %v278 = vunpack.c.l.b16 %v85
    %v279 = vunpack.c.h.b16 %v85
    %v280 = vunpack.c.l.b16 %v86
    %v281 = vunpack.c.h.b16 %v86
    %v282 = vunpack.c.l.b16 %v87
    %v283 = vunpack.c.h.b16 %v87
    %v284 = vunpack.c.l.b16 %v88
    %v285 = vunpack.c.h.b16 %v88
    %v286 = vunpack.c.l.b16 %v89
    %v287 = vunpack.c.h.b16 %v89
    %v288 = vunpack.c.l.b16 %v90
    %v289 = vunpack.c.h.b16 %v90
    %v290 = vunpack.c.l.b16 %v91
    %v291 = vunpack.c.h.b16 %v91
    %v292 = vunpack.c.l.b16 %v92
    %v293 = vunpack.c.h.b16 %v92
    %v294 = vunpack.c.l.b16 %v93
    %v295 = vunpack.c.h.b16 %v93
    %v296 = vunpack.c.l.b16 %v94
    %v297 = vunpack.c.h.b16 %v94
    %v298 = vunpack.c.l.b16 %v95
    %v299 = vunpack.c.h.b16 %v95
    %v300 = vunpack.c.l.b16 %v96
    %v301 = vunpack.c.h.b16 %v96
    %v302 = vunpack.c.l.b16 %v97
    %v303 = vunpack.c.h.b16 %v97
    %v304 = vunpack.c.l.b16 %v98
    %v305 = vunpack.c.h.b16 %v98
    %v306 = vunpack.c.l.b16 %v99
    %v307 = vunpack.c.h.b16 %v99
    %v308 = vunpack.c.l.b16 %v100
    %v309 = vunpack.c.h.b16 %v100
    %v310 = vunpack.c.l.b16 %v101
    %v311 = vunpack.c.h.b16 %v101
    %v312 = vunpack.c.l.b16 %v102
    %v313 = vunpack.c.h.b16 %v102
    %v314 = vunpack.c.l.b16 %v103
    %v315 = vunpack.c.h.b16 %v103
    %v316 = vunpack.c.l.b16 %v104
    %v317 = vunpack.c.h.b16 %v104
    %v318 = vunpack.c.l.b16 %v105
    %v319 = vunpack.c.h.b16 %v105
    %v320 = vunpack.c.l.b16 %v106
    %v321 = vunpack.c.h.b16 %v106
    %v322 = vunpack.c.l.b16 %v107
    %v323 = vunpack.c.h.b16 %v107
    %v324 = vunpack.c.l.b16 %v108
    %v325 = vunpack.c.h.b16 %v108
    %v326 = vunpack.c.l.b16 %v109
    %v327 = vunpack.c.h.b16 %v109
    %v328 = vunpack.c.l.b16 %v110
    %v329 = vunpack.c.h.b16 %v110
    %v330 = vunpack.c.l.b16 %v111
    %v331 = vunpack.c.h.b16 %v111
    %v332 = vunpack.c.l.b16 %v112
    %v333 = vunpack.c.h.b16 %v112
    %v334 = vunpack.c.l.b16 %v113
    %v335 = vunpack.c.h.b16 %v113
    %v336 = vunpack.c.l.b16 %v114
    %v337 = vunpack.c.h.b16 %v114
    %v338 = vunpack.c.l.b16 %v115
    %v339 = vunpack.c.h.b16 %v115
    %v340 = vunpack.c.l.b16 %v116
    %v341 = vunpack.c.h.b16 %v116
    %v342 = vunpack.c.l.b16 %v117
    %v343 = vunpack.c.h.b16 %v117
    %v344 = vunpack.c.l.b16 %v118
    %v345 = vunpack.c.h.b16 %v118
    %v346 = vunpack.c.l.b16 %v119
    %v347 = vunpack.c.h.b16 %v119
    %v348 = vunpack.c.l.b16 %v120
    %v349 = vunpack.c.h.b16 %v120
    %v350 = vunpack.c.l.b16 %v121
    %v351 = vunpack.c.h.b16 %v121
    %v352 = vunpack.c.l.b16 %v122
    %v353 = vunpack.c.h.b16 %v122
    %v354 = vunpack.c.l.b16 %v123
    %v355 = vunpack.c.h.b16 %v123
    %v356 = vunpack.c.l.b16 %v124
    %v357 = vunpack.c.h.b16 %v124
    %v358 = vunpack.c.l.b16 %v125
    %v359 = vunpack.c.h.b16 %v125
    %v360 = vunpack.c.l.b16 %v126
    %v361 = vunpack.c.h.b16 %v126
    %v362 = vunpack.c.l.b16 %v127
    %v363 = vunpack.c.h.b16 %v127
    %v364 = vunpack.c.l.b16 %v128
    %v365 = vunpack.c.h.b16 %v128
    %v366 = vunpack.c.l.b16 %v129
    %v367 = vunpack.c.h.b16 %v129
    %v368 = vunpack.c.l.b16 %v130
    %v369 = vunpack.c.h.b16 %v130
    %v370 = vunpack.c.l.b16 %v131
    %v371 = vunpack.c.h.b16 %v131
    %v372 = vunpack.c.l.b16 %v132
    %v373 = vunpack.c.h.b16 %v132
    %v374 = vunpack.c.l.b16 %v133
    %v375 = vunpack.c.h.b16 %v133
    %v376 = vunpack.c.l.b16 %v134
    %v377 = vunpack.c.h.b16 %v134
    %v378 = vunpack.c.l.b16 %v135
    %v379 = vunpack.c.h.b16 %v135
    %v380 = vunpack.c.l.b16 %v136
    %v381 = vunpack.c.h.b16 %v136
    %v382 = vunpack.c.l.b16 %v137
    %v383 = vunpack.c.h.b16 %v137
    %v384 = vunpack.c.l.b16 %v138
    %v385 = vunpack.c.h.b16 %v138
    %v386 = vunpack.c.l.b16 %v139
    %v387 = vunpack.c.h.b16 %v139
    %v388 = vpack.c.b16 %v250, %v244
    %v389 = vpack.c.b16 %v251, %v245
    %v390 = vpack.c.b16 %v252, %v246
    %v391 = vpack.c.b16 %v253, %v247
    %v392 = vpack.c.b16 %v254, %v248
    %v393 = vpack.c.b16 %v255, %v249
    %v394 = vpack.c.b16 %v262, %v256
    %v395 = vpack.c.b16 %v263, %v257
    %v396 = vpack.c.b16 %v264, %v258
    %v397 = vpack.c.b16 %v265, %v259
    %v398 = vpack.c.b16 %v266, %v260
    %v399 = vpack.c.b16 %v267, %v261
    %v400 = vpack.c.b16 %v274, %v268
    %v401 = vpack.c.b16 %v275, %v269
    %v402 = vpack.c.b16 %v276, %v270
    %v403 = vpack.c.b16 %v277, %v271
    %v404 = vpack.c.b16 %v278, %v272
    %v405 = vpack.c.b16 %v279, %v273
    %v406 = vpack.c.b16 %v286, %v280
    %v407 = vpack.c.b16 %v287, %v281
    %v408 = vpack.c.b16 %v288, %v282
    %v409 = vpack.c.b16 %v289, %v283
    %v410 = vpack.c.b16 %v290, %v284
    %v411 = vpack.c.b16 %v291, %v285
    %v412 = vpack.c.b16 %v298, %v292
    %v413 = vpack.c.b16 %v299, %v293
    %v414 = vpack.c.b16 %v300, %v294
    %v415 = vpack.c.b16 %v301, %v295
    %v416 = vpack.c.b16 %v302, %v296
    %v417 = vpack.c.b16 %v303, %v297
    %v418 = vpack.c.b16 %v310, %v304
    %v419 = vpack.c.b16 %v311, %v305
    %v420 = vpack.c.b16 %v312, %v306
    %v421 = vpack.c.b16 %v313, %v307
    %v422 = vpack.c.b16 %v314, %v308
    %v423 = vpack.c.b16 %v315, %v309
    %v424 = vpack.c.b16 %v322, %v316
    %v425 = vpack.c.b16 %v323, %v317
    %v426 = vpack.c.b16 %v324, %v318
    %v427 = vpack.c.b16 %v325, %v319
    %v428 = vpack.c.b16 %v326, %v320
    %v429 = vpack.c.b16 %v327, %v321
    %v430 = vpack.c.b16 %v334, %v328
    %v431 = vpack.c.b16 %v335, %v329
    %v432 = vpack.c.b16 %v336, %v330
    %v433 = vpack.c.b16 %v337, %v331
    %v434 = vpack.c.b16 %v338, %v332
    %v435 = vpack.c.b16 %v339, %v333
    %v436 = vpack.c.b16 %v346, %v340
    %v437 = vpack.c.b16 %v347, %v341
    %v438 = vpack.c.b16 %v348, %v342
    %v439 = vpack.c.b16 %v349, %v343
    %v440 = vpack.c.b16 %v350, %v344
    %v441 = vpack.c.b16 %v351, %v345
    %v442 = vpack.c.b16 %v358, %v352
    %v443 = vpack.c.b16 %v359, %v353
    %v444 = vpack.c.b16 %v360, %v354
    %v445 = vpack.c.b16 %v361, %v355
    %v446 = vpack.c.b16 %v362, %v356
    %v447 = vpack.c.b16 %v363, %v357
    %v448 = vpack.c.b16 %v370, %v364
    %v449 = vpack.c.b16 %v371, %v365
    %v450 = vpack.c.b16 %v372, %v366
    %v451 = vpack.c.b16 %v373, %v367
    %v452 = vpack.c.b16 %v374, %v368
    %v453 = vpack.c.b16 %v375, %v369
    %v454 = vpack.c.b16 %v382, %v376
    %v455 = vpack.c.b16 %v383, %v377
    %v456 = vpack.c.b16 %v384, %v378
    %v457 = vpack.c.b16 %v385, %v379
    %v458 = vpack.c.b16 %v386, %v380
    %v459 = vpack.c.b16 %v387, %v381
    %vm532 = vcmask 523264
    %v534 = vsel %vm532, %v67, 0
    %536 = vmatprep.subr.bf16.mxu0 %v389
    %537 = vmatpush1.bf16.msra.mxu0 %v388
    %538 = vmatprep.subr.bf16.mxu0 %v395
    %539 = vmatpush1.bf16.msra.mxu0 %v394
    %540 = vmatprep.subr.bf16.mxu0 %v401
    %541 = vmatpush1.bf16.msra.mxu0 %v400
    %542 = vmatprep.subr.bf16.mxu0 %v407
    %543 = vmatpush1.bf16.msra.mxu0 %v406
    %544 = vmatprep.subr.bf16.mxu0 %v413
    %545 = vmatpush1.bf16.msra.mxu0 %v412
    %546 = vmatprep.subr.bf16.mxu0 %v419
    %547 = vmatpush1.bf16.msra.mxu0 %v418
    %548 = vmatprep.subr.bf16.mxu0 %v425
    %549 = vmatpush1.bf16.msra.mxu0 %v424
    %550 = vmatprep.subr.bf16.mxu0 %v431
    %551 = vmatpush1.bf16.msra.mxu0 %v430
    %552 = vmatprep.subr.bf16.mxu0 %v437
    %553 = vmatpush1.bf16.msra.mxu0 %v436
    %554 = vmatprep.subr.bf16.mxu0 %v443
    %555 = vmatpush1.bf16.msra.mxu0 %v442
    %556 = vmatprep.subr.bf16.mxu0 %v449
    %557 = vmatpush1.bf16.msra.mxu0 %v448
    %558 = vmatprep.subr.bf16.mxu0 %v455
    %559 = vmatpush1.bf16.msra.mxu0 %v454
    %560 = vmatprep.subr.bf16.mxu0 0
    %561 = vmatpush1.bf16.msra.mxu0 0
    %562 = vmatprep.subr.bf16.mxu0 0
    %563 = vmatpush1.bf16.msra.mxu0 0
    %564 = vmatprep.subr.bf16.mxu0 0
    %565 = vmatpush1.bf16.msra.mxu0 0
    %566 = vmatprep.subr.bf16.mxu0 0
    %567 = vmatpush1.bf16.msra.mxu0 0
    %568 = vmatprep.mubr.bf16.mxu0 %v534
    %569 = vmatmul.mubr.bf16.gmra.mrb[0].mxu0 %v66
    %v570 = vpop.f32.mrb[0].mxu0
    %v571 = vadd.f32 %v145, %v570
    %v572 = vpop.f32.mrb[0].mxu0
    %v573 = vadd.f32 %v149, %v572
    %v574 = vpop.f32.mrb[0].mxu0
    %v575 = vpop.f32.mrb[0].mxu0
    %576 = vdwg.mxu0
    %577 = vmatprep.subr.bf16.mxu0 %v391
    %578 = vmatpush1.bf16.msra.mxu0 %v390
    %579 = vmatprep.subr.bf16.mxu0 %v397
    %580 = vmatpush1.bf16.msra.mxu0 %v396
    %581 = vmatprep.subr.bf16.mxu0 %v403
    %582 = vmatpush1.bf16.msra.mxu0 %v402
    %583 = vmatprep.subr.bf16.mxu0 %v409
    %584 = vmatpush1.bf16.msra.mxu0 %v408
    %585 = vmatprep.subr.bf16.mxu0 %v415
    %586 = vmatpush1.bf16.msra.mxu0 %v414
    %587 = vmatprep.subr.bf16.mxu0 %v421
    %588 = vmatpush1.bf16.msra.mxu0 %v420
    %589 = vmatprep.subr.bf16.mxu0 %v427
    %590 = vmatpush1.bf16.msra.mxu0 %v426
    %591 = vmatprep.subr.bf16.mxu0 %v433
    %592 = vmatpush1.bf16.msra.mxu0 %v432
    %593 = vmatprep.subr.bf16.mxu0 %v439
    %594 = vmatpush1.bf16.msra.mxu0 %v438
    %595 = vmatprep.subr.bf16.mxu0 %v445
    %596 = vmatpush1.bf16.msra.mxu0 %v444
    %597 = vmatprep.subr.bf16.mxu0 %v451
    %598 = vmatpush1.bf16.msra.mxu0 %v450
    %599 = vmatprep.subr.bf16.mxu0 %v457
    %600 = vmatpush1.bf16.msra.mxu0 %v456
    %601 = vmatprep.subr.bf16.mxu0 0
    %602 = vmatpush1.bf16.msra.mxu0 0
    %603 = vmatprep.subr.bf16.mxu0 0
    %604 = vmatpush1.bf16.msra.mxu0 0
    %605 = vmatprep.subr.bf16.mxu0 0
    %606 = vmatpush1.bf16.msra.mxu0 0
    %607 = vmatprep.subr.bf16.mxu0 0
    %608 = vmatpush1.bf16.msra.mxu0 0
    %609 = vmatprep.mubr.bf16.mxu0 %v534
    %610 = vmatmul.mubr.bf16.gmra.mrb[0].mxu0 %v66
    %v611 = vpop.f32.mrb[0].mxu0
    %v612 = vadd.f32 %v153, %v611
    %v613 = vpop.f32.mrb[0].mxu0
    %v614 = vadd.f32 %v157, %v613
    %v615 = vpop.f32.mrb[0].mxu0
    %v616 = vpop.f32.mrb[0].mxu0
    %617 = vdwg.mxu0
    %618 = vmatprep.subr.bf16.mxu0 %v393
    %619 = vmatpush1.bf16.msra.mxu0 %v392
    %620 = vmatprep.subr.bf16.mxu0 %v399
    %621 = vmatpush1.bf16.msra.mxu0 %v398
    %622 = vmatprep.subr.bf16.mxu0 %v405
    %623 = vmatpush1.bf16.msra.mxu0 %v404
    %624 = vmatprep.subr.bf16.mxu0 %v411
    %625 = vmatpush1.bf16.msra.mxu0 %v410
    %626 = vmatprep.subr.bf16.mxu0 %v417
    %627 = vmatpush1.bf16.msra.mxu0 %v416
    %628 = vmatprep.subr.bf16.mxu0 %v423
    %629 = vmatpush1.bf16.msra.mxu0 %v422
    %630 = vmatprep.subr.bf16.mxu0 %v429
    %631 = vmatpush1.bf16.msra.mxu0 %v428
    %632 = vmatprep.subr.bf16.mxu0 %v435
    %633 = vmatpush1.bf16.msra.mxu0 %v434
    %634 = vmatprep.subr.bf16.mxu0 %v441
    %635 = vmatpush1.bf16.msra.mxu0 %v440
    %636 = vmatprep.subr.bf16.mxu0 %v447
    %637 = vmatpush1.bf16.msra.mxu0 %v446
    %638 = vmatprep.subr.bf16.mxu0 %v453
    %639 = vmatpush1.bf16.msra.mxu0 %v452
    %640 = vmatprep.subr.bf16.mxu0 %v459
    %641 = vmatpush1.bf16.msra.mxu0 %v458
    %642 = vmatprep.subr.bf16.mxu0 0
    %643 = vmatpush1.bf16.msra.mxu0 0
    %644 = vmatprep.subr.bf16.mxu0 0
    %645 = vmatpush1.bf16.msra.mxu0 0
    %646 = vmatprep.subr.bf16.mxu0 0
    %647 = vmatpush1.bf16.msra.mxu0 0
    %648 = vmatprep.subr.bf16.mxu0 0
    %649 = vmatpush1.bf16.msra.mxu0 0
    %650 = vmatprep.mubr.bf16.mxu0 %v534
    %651 = vmatmul.mubr.bf16.gmra.mrb[0].mxu0 %v66
    %v652 = vpop.f32.mrb[0].mxu0
    %v653 = vadd.f32 %v161, %v652
    %v654 = vpop.f32.mrb[0].mxu0
    %v655 = vadd.f32 %v165, %v654
    %v656 = vpop.f32.mrb[0].mxu0
    %v657 = vpop.f32.mrb[0].mxu0
    %658 = vdwg.mxu0
    %v659 = vmul.f32 %v571, 0.2
    %v660 = vmul.f32 %v573, 0.2
    %v661 = vmul.f32 %v612, 0.2
    %v662 = vmul.f32 %v614, 0.2
    %v663 = vmul.f32 %v653, 0.2
    %v664 = vmul.f32 %v655, 0.2
    %v665 = vmax.f32 %v571, %v659
    %v666 = vmax.f32 %v573, %v660
    %v667 = vmax.f32 %v612, %v661
    %v668 = vmax.f32 %v614, %v662
    %v669 = vmax.f32 %v653, %v663
    %v670 = vmax.f32 %v655, %v664
    %v671 = vpack.c.bf16 %v665, %v665
    %v672 = vpack.c.bf16 %v666, %v666
    %v673 = vpack.c.bf16 %v667, %v667
    %v674 = vpack.c.bf16 %v668, %v668
    %v675 = vpack.c.bf16 %v669, %v669
    %v676 = vpack.c.bf16 %v670, %v670
    %v677 = vld [vmem:[%s4] sm:$0xf]
    %v678 = vld [vmem:[%s4 + $0x4] sm:$0xf]
    %v679 = vld [vmem:[%s4 + $0x8] sm:$0xf]
    %v680 = vld [vmem:[%s4 + $0xc] sm:$0xf]
    %v681 = vld [vmem:[%s4 + $0x10] sm:$0xf]
    %v682 = vld [vmem:[%s4 + $0x14] sm:$0xf]
    %v683 = vld [vmem:[%s4 + $0x18] sm:$0xf]
    %v684 = vld [vmem:[%s4 + $0x1c] sm:$0xf]
    %v685 = vld [vmem:[%s4 + $0x20] sm:$0xf]
    %v686 = vld [vmem:[%s4 + $0x24] sm:$0xf]
    %v687 = vld [vmem:[%s4 + $0x28] sm:$0xf]
    %v688 = vld [vmem:[%s4 + $0x2c] sm:$0xf]
    %v689 = vld [vmem:[%s4 + $0x30] sm:$0xf]
    %v690 = vld [vmem:[%s4 + $0x34] sm:$0xf]
    %v691 = vld [vmem:[%s4 + $0x38] sm:$0xf]
    %v692 = vld [vmem:[%s4 + $0x3c] sm:$0xf]
    %v693 = vld [vmem:[%s4 + $0x40] sm:$0xf]
    %v694 = vld [vmem:[%s4 + $0x44] sm:$0xf]
    %v695 = vld [vmem:[%s4 + $0x48] sm:$0xf]
    %v696 = vld [vmem:[%s4 + $0x4c] sm:$0xf]
    %v697 = vld [vmem:[%s4 + $0x50] sm:$0xf]
    %v698 = vld [vmem:[%s4 + $0x54] sm:$0xf]
    %v699 = vld [vmem:[%s4 + $0x58] sm:$0xf]
    %v700 = vld [vmem:[%s4 + $0x5c] sm:$0xf]
    %v701 = vld [vmem:[%s4 + $0x60] sm:$0xf]
    %v702 = vld [vmem:[%s4 + $0x64] sm:$0xf]
    %v703 = vld [vmem:[%s4 + $0x68] sm:$0xf]
    %v704 = vld [vmem:[%s4 + $0x6c] sm:$0xf]
    %v705 = vld [vmem:[%s4 + $0x70] sm:$0xf]
    %v706 = vld [vmem:[%s4 + $0x74] sm:$0xf]
    %v707 = vld [vmem:[%s4 + $0x78] sm:$0xf]
    %v708 = vld [vmem:[%s4 + $0x7c] sm:$0xf]
    %v709 = vld [vmem:[%s4 + $0x80] sm:$0xf]
    %v710 = vld [vmem:[%s4 + $0x84] sm:$0xf]
    %v711 = vld [vmem:[%s4 + $0x88] sm:$0xf]
    %v712 = vld [vmem:[%s4 + $0x8c] sm:$0xf]
    %v713 = vld [vmem:[%s4 + $0x90] sm:$0xf]
    %v714 = vld [vmem:[%s4 + $0x94] sm:$0xf]
    %v715 = vld [vmem:[%s4 + $0x98] sm:$0xf]
    %v716 = vld [vmem:[%s4 + $0x9c] sm:$0xf]
    %v717 = vld [vmem:[%s4 + $0xa0] sm:$0xf]
    %v718 = vld [vmem:[%s4 + $0xa4] sm:$0xf]
    %v719 = vld [vmem:[%s4 + $0xa8] sm:$0xf]
    %v720 = vld [vmem:[%s4 + $0xac] sm:$0xf]
    %v721 = vld [vmem:[%s4 + $0xb0] sm:$0xf]
    %v722 = vld [vmem:[%s4 + $0xb4] sm:$0xf]
    %v723 = vld [vmem:[%s4 + $0xb8] sm:$0xf]
    %v724 = vld [vmem:[%s4 + $0xbc] sm:$0xf]
    %v725 = vld [vmem:[%s4 + $0xc0] sm:$0xf]
    %v726 = vld [vmem:[%s4 + $0xc4] sm:$0xf]
    %v727 = vld [vmem:[%s4 + $0xc8] sm:$0xf]
    %v728 = vld [vmem:[%s4 + $0xcc] sm:$0xf]
    %v729 = vld [vmem:[%s4 + $0xd0] sm:$0xf]
    %v730 = vld [vmem:[%s4 + $0xd4] sm:$0xf]
    %v731 = vld [vmem:[%s4 + $0xd8] sm:$0xf]
    %v732 = vld [vmem:[%s4 + $0xdc] sm:$0xf]
    %v733 = vld [vmem:[%s4 + $0xe0] sm:$0xf]
    %v734 = vld [vmem:[%s4 + $0xe4] sm:$0xf]
    %v735 = vld [vmem:[%s4 + $0xe8] sm:$0xf]
    %v736 = vld [vmem:[%s4 + $0xec] sm:$0xf]
    %v737 = vld [vmem:[%s4 + $0xf0] sm:$0xf]
    %v738 = vld [vmem:[%s4 + $0xf4] sm:$0xf]
    %v739 = vld [vmem:[%s4 + $0xf8] sm:$0xf]
    %v740 = vld [vmem:[%s4 + $0xfc] sm:$0xf]
    %v741 = vld [vmem:[%s4 + $0x100] sm:$0xf]
    %v742 = vld [vmem:[%s4 + $0x104] sm:$0xf]
    %v743 = vld [vmem:[%s4 + $0x108] sm:$0xf]
    %v744 = vld [vmem:[%s4 + $0x10c] sm:$0xf]
    %v745 = vld [vmem:[%s4 + $0x110] sm:$0xf]
    %v746 = vld [vmem:[%s4 + $0x114] sm:$0xf]
    %v747 = vld [vmem:[%s4 + $0x118] sm:$0xf]
    %v748 = vld [vmem:[%s4 + $0x11c] sm:$0xf]
    %v749 = vld [vmem:[%s4 + $0x120] sm:$0xf]
    %v750 = vld [vmem:[%s4 + $0x124] sm:$0xf]
    %v751 = vld [vmem:[%s4 + $0x128] sm:$0xf]
    %v752 = vld [vmem:[%s4 + $0x12c] sm:$0xf]
    %v753 = vld [vmem:[%s4 + $0x130] sm:$0xf]
    %v754 = vld [vmem:[%s4 + $0x134] sm:$0xf]
    %v755 = vld [vmem:[%s4 + $0x138] sm:$0xf]
    %v756 = vld [vmem:[%s4 + $0x13c] sm:$0xf]
    %v757 = vld [vmem:[%s4 + $0x140] sm:$0xf]
    %v758 = vld [vmem:[%s4 + $0x144] sm:$0xf]
    %v759 = vld [vmem:[%s4 + $0x148] sm:$0xf]
    %v760 = vld [vmem:[%s4 + $0x14c] sm:$0xf]
    %v761 = vld [vmem:[%s4 + $0x150] sm:$0xf]
    %v762 = vld [vmem:[%s4 + $0x154] sm:$0xf]
    %v763 = vld [vmem:[%s4 + $0x158] sm:$0xf]
    %v764 = vld [vmem:[%s4 + $0x15c] sm:$0xf]
    %v765 = vld [vmem:[%s4 + $0x160] sm:$0xf]
    %v766 = vld [vmem:[%s4 + $0x164] sm:$0xf]
    %v767 = vld [vmem:[%s4 + $0x168] sm:$0xf]
    %v768 = vld [vmem:[%s4 + $0x16c] sm:$0xf]
    %v769 = vld [vmem:[%s4 + $0x170] sm:$0xf]
    %v770 = vld [vmem:[%s4 + $0x174] sm:$0xf]
    %v771 = vld [vmem:[%s4 + $0x178] sm:$0xf]
    %v772 = vld [vmem:[%s4 + $0x17c] sm:$0xf]
    %v773 = vld [vmem:[%s5] sm:$0x1]
    %v775 = vlaneseq
    %v776 = vshrl.u32 %v775, 7
    %v777 = vsub.s32 0, %v776
    %v778 = vrot.slane %v773, %v777
    %v876 = vunpack.c.l.b16 %v677
    %v877 = vunpack.c.l.b16 %v678
    %v878 = vunpack.c.l.b16 %v679
    %v879 = vunpack.c.l.b16 %v680
    %v880 = vunpack.c.l.b16 %v681
    %v881 = vunpack.c.l.b16 %v682
    %v882 = vunpack.c.l.b16 %v683
    %v883 = vunpack.c.l.b16 %v684
    %v884 = vunpack.c.l.b16 %v685
    %v885 = vunpack.c.l.b16 %v686
    %v886 = vunpack.c.l.b16 %v687
    %v887 = vunpack.c.l.b16 %v688
    %v888 = vunpack.c.l.b16 %v689
    %v889 = vunpack.c.l.b16 %v690
    %v890 = vunpack.c.l.b16 %v691
    %v891 = vunpack.c.l.b16 %v692
    %v892 = vunpack.c.l.b16 %v693
    %v893 = vunpack.c.l.b16 %v694
    %v894 = vunpack.c.l.b16 %v695
    %v895 = vunpack.c.l.b16 %v696
    %v896 = vunpack.c.l.b16 %v697
    %v897 = vunpack.c.l.b16 %v698
    %v898 = vunpack.c.l.b16 %v699
    %v899 = vunpack.c.l.b16 %v700
    %v900 = vunpack.c.l.b16 %v701
    %v901 = vunpack.c.l.b16 %v702
    %v902 = vunpack.c.l.b16 %v703
    %v903 = vunpack.c.l.b16 %v704
    %v904 = vunpack.c.l.b16 %v705
    %v905 = vunpack.c.l.b16 %v706
    %v906 = vunpack.c.l.b16 %v707
    %v907 = vunpack.c.l.b16 %v708
    %v908 = vunpack.c.l.b16 %v709
    %v909 = vunpack.c.l.b16 %v710
    %v910 = vunpack.c.l.b16 %v711
    %v911 = vunpack.c.l.b16 %v712
    %v912 = vunpack.c.l.b16 %v713
    %v913 = vunpack.c.l.b16 %v714
    %v914 = vunpack.c.l.b16 %v715
    %v915 = vunpack.c.l.b16 %v716
    %v916 = vunpack.c.l.b16 %v717
    %v917 = vunpack.c.l.b16 %v718
    %v918 = vunpack.c.l.b16 %v719
    %v919 = vunpack.c.l.b16 %v720
    %v920 = vunpack.c.l.b16 %v721
    %v921 = vunpack.c.l.b16 %v722
    %v922 = vunpack.c.l.b16 %v723
    %v923 = vunpack.c.l.b16 %v724
    %v924 = vunpack.c.l.b16 %v725
    %v925 = vunpack.c.l.b16 %v726
    %v926 = vunpack.c.l.b16 %v727
    %v927 = vunpack.c.l.b16 %v728
    %v928 = vunpack.c.l.b16 %v729
    %v929 = vunpack.c.l.b16 %v730
    %v930 = vunpack.c.l.b16 %v731
    %v931 = vunpack.c.l.b16 %v732
    %v932 = vunpack.c.l.b16 %v733
    %v933 = vunpack.c.l.b16 %v734
    %v934 = vunpack.c.l.b16 %v735
    %v935 = vunpack.c.l.b16 %v736
    %v936 = vunpack.c.l.b16 %v737
    %v937 = vunpack.c.l.b16 %v738
    %v938 = vunpack.c.l.b16 %v739
    %v939 = vunpack.c.l.b16 %v740
    %v940 = vunpack.c.l.b16 %v741
    %v941 = vunpack.c.l.b16 %v742
    %v942 = vunpack.c.l.b16 %v743
    %v943 = vunpack.c.l.b16 %v744
    %v944 = vunpack.c.l.b16 %v745
    %v945 = vunpack.c.l.b16 %v746
    %v946 = vunpack.c.l.b16 %v747
    %v947 = vunpack.c.l.b16 %v748
    %v948 = vunpack.c.l.b16 %v749
    %v949 = vunpack.c.l.b16 %v750
    %v950 = vunpack.c.l.b16 %v751
    %v951 = vunpack.c.l.b16 %v752
    %v952 = vunpack.c.l.b16 %v753
    %v953 = vunpack.c.l.b16 %v754
    %v954 = vunpack.c.l.b16 %v755
    %v955 = vunpack.c.l.b16 %v756
    %v956 = vunpack.c.l.b16 %v757
    %v957 = vunpack.c.l.b16 %v758
    %v958 = vunpack.c.l.b16 %v759
    %v959 = vunpack.c.l.b16 %v760
    %v960 = vunpack.c.l.b16 %v761
    %v961 = vunpack.c.l.b16 %v762
    %v962 = vunpack.c.l.b16 %v763
    %v963 = vunpack.c.l.b16 %v764
    %v964 = vunpack.c.l.b16 %v765
    %v965 = vunpack.c.l.b16 %v766
    %v966 = vunpack.c.l.b16 %v767
    %v967 = vunpack.c.l.b16 %v768
    %v968 = vunpack.c.l.b16 %v769
    %v969 = vunpack.c.l.b16 %v770
    %v970 = vunpack.c.l.b16 %v771
    %v971 = vunpack.c.l.b16 %v772
    %v972 = vpack.c.b16 %v877, %v876
    %v973 = vpack.c.b16 %v879, %v878
    %v974 = vpack.c.b16 %v881, %v880
    %v975 = vpack.c.b16 %v883, %v882
    %v976 = vpack.c.b16 %v885, %v884
    %v977 = vpack.c.b16 %v887, %v886
    %v978 = vpack.c.b16 %v889, %v888
    %v979 = vpack.c.b16 %v891, %v890
    %v980 = vpack.c.b16 %v893, %v892
    %v981 = vpack.c.b16 %v895, %v894
    %v982 = vpack.c.b16 %v897, %v896
    %v983 = vpack.c.b16 %v899, %v898
    %v984 = vpack.c.b16 %v901, %v900
    %v985 = vpack.c.b16 %v903, %v902
    %v986 = vpack.c.b16 %v905, %v904
    %v987 = vpack.c.b16 %v907, %v906
    %v988 = vpack.c.b16 %v909, %v908
    %v989 = vpack.c.b16 %v911, %v910
    %v990 = vpack.c.b16 %v913, %v912
    %v991 = vpack.c.b16 %v915, %v914
    %v992 = vpack.c.b16 %v917, %v916
    %v993 = vpack.c.b16 %v919, %v918
    %v994 = vpack.c.b16 %v921, %v920
    %v995 = vpack.c.b16 %v923, %v922
    %v996 = vpack.c.b16 %v925, %v924
    %v997 = vpack.c.b16 %v927, %v926
    %v998 = vpack.c.b16 %v929, %v928
    %v999 = vpack.c.b16 %v931, %v930
    %v1000 = vpack.c.b16 %v933, %v932
    %v1001 = vpack.c.b16 %v935, %v934
    %v1002 = vpack.c.b16 %v937, %v936
    %v1003 = vpack.c.b16 %v939, %v938
    %v1004 = vpack.c.b16 %v941, %v940
    %v1005 = vpack.c.b16 %v943, %v942
    %v1006 = vpack.c.b16 %v945, %v944
    %v1007 = vpack.c.b16 %v947, %v946
    %v1008 = vpack.c.b16 %v949, %v948
    %v1009 = vpack.c.b16 %v951, %v950
    %v1010 = vpack.c.b16 %v953, %v952
    %v1011 = vpack.c.b16 %v955, %v954
    %v1012 = vpack.c.b16 %v957, %v956
    %v1013 = vpack.c.b16 %v959, %v958
    %v1014 = vpack.c.b16 %v961, %v960
    %v1015 = vpack.c.b16 %v963, %v962
    %v1016 = vpack.c.b16 %v965, %v964
    %v1017 = vpack.c.b16 %v967, %v966
    %v1018 = vpack.c.b16 %v969, %v968
    %v1019 = vpack.c.b16 %v971, %v970
    %1068 = vmatprep.subr.bf16.mxu0 0
    %1069 = vmatpush1.bf16.msra.mxu0 %v972
    %1070 = vmatprep.subr.bf16.mxu0 0
    %1071 = vmatpush1.bf16.msra.mxu0 %v973
    %1072 = vmatprep.subr.bf16.mxu0 0
    %1073 = vmatpush1.bf16.msra.mxu0 %v974
    %1074 = vmatprep.subr.bf16.mxu0 0
    %1075 = vmatpush1.bf16.msra.mxu0 %v975
    %1076 = vmatprep.subr.bf16.mxu0 0
    %1077 = vmatpush1.bf16.msra.mxu0 %v976
    %1078 = vmatprep.subr.bf16.mxu0 0
    %1079 = vmatpush1.bf16.msra.mxu0 %v977
    %1080 = vmatprep.subr.bf16.mxu0 0
    %1081 = vmatpush1.bf16.msra.mxu0 %v978
    %1082 = vmatprep.subr.bf16.mxu0 0
    %1083 = vmatpush1.bf16.msra.mxu0 %v979
    %1084 = vmatprep.subr.bf16.mxu0 0
    %1085 = vmatpush1.bf16.msra.mxu0 %v980
    %1086 = vmatprep.subr.bf16.mxu0 0
    %1087 = vmatpush1.bf16.msra.mxu0 %v981
    %1088 = vmatprep.subr.bf16.mxu0 0
    %1089 = vmatpush1.bf16.msra.mxu0 %v982
    %1090 = vmatprep.subr.bf16.mxu0 0
    %1091 = vmatpush1.bf16.msra.mxu0 %v983
    %1092 = vmatprep.subr.bf16.mxu0 0
    %1093 = vmatpush1.bf16.msra.mxu0 %v984
    %1094 = vmatprep.subr.bf16.mxu0 0
    %1095 = vmatpush1.bf16.msra.mxu0 %v985
    %1096 = vmatprep.subr.bf16.mxu0 0
    %1097 = vmatpush1.bf16.msra.mxu0 %v986
    %1098 = vmatprep.subr.bf16.mxu0 0
    %1099 = vmatpush1.bf16.msra.mxu0 %v987
    %1100 = vmatprep.mubr.bf16.mxu0 %v672
    %1101 = vmatmul.mubr.bf16.gmra.mrb[0].mxu0 %v671
    %v1102 = vpop.f32.mrb[0].mxu0
    %v1103 = vadd.f32 %v778, %v1102
    %v1104 = vpop.f32.mrb[0].mxu0
    %v1105 = vpop.f32.mrb[0].mxu0
    %v1106 = vpop.f32.mrb[0].mxu0
    %1107 = vdwg.mxu0
    %1108 = vmatprep.subr.bf16.mxu0 0
    %1109 = vmatpush1.bf16.msra.mxu0 %v988
    %1110 = vmatprep.subr.bf16.mxu0 0
    %1111 = vmatpush1.bf16.msra.mxu0 %v989
    %1112 = vmatprep.subr.bf16.mxu0 0
    %1113 = vmatpush1.bf16.msra.mxu0 %v990
    %1114 = vmatprep.subr.bf16.mxu0 0
    %1115 = vmatpush1.bf16.msra.mxu0 %v991
    %1116 = vmatprep.subr.bf16.mxu0 0
    %1117 = vmatpush1.bf16.msra.mxu0 %v992
    %1118 = vmatprep.subr.bf16.mxu0 0
    %1119 = vmatpush1.bf16.msra.mxu0 %v993
    %1120 = vmatprep.subr.bf16.mxu0 0
    %1121 = vmatpush1.bf16.msra.mxu0 %v994
    %1122 = vmatprep.subr.bf16.mxu0 0
    %1123 = vmatpush1.bf16.msra.mxu0 %v995
    %1124 = vmatprep.subr.bf16.mxu0 0
    %1125 = vmatpush1.bf16.msra.mxu0 %v996
    %1126 = vmatprep.subr.bf16.mxu0 0
    %1127 = vmatpush1.bf16.msra.mxu0 %v997
    %1128 = vmatprep.subr.bf16.mxu0 0
    %1129 = vmatpush1.bf16.msra.mxu0 %v998
    %1130 = vmatprep.subr.bf16.mxu0 0
    %1131 = vmatpush1.bf16.msra.mxu0 %v999
    %1132 = vmatprep.subr.bf16.mxu0 0
    %1133 = vmatpush1.bf16.msra.mxu0 %v1000
    %1134 = vmatprep.subr.bf16.mxu0 0
    %1135 = vmatpush1.bf16.msra.mxu0 %v1001
    %1136 = vmatprep.subr.bf16.mxu0 0
    %1137 = vmatpush1.bf16.msra.mxu0 %v1002
    %1138 = vmatprep.subr.bf16.mxu0 0
    %1139 = vmatpush1.bf16.msra.mxu0 %v1003
    %1140 = vmatprep.mubr.bf16.mxu0 %v674
    %1141 = vmatmul.mubr.bf16.gmra.mrb[0].mxu0 %v673
    %v1142 = vpop.f32.mrb[0].mxu0
    %v1143 = vadd.f32 %v1103, %v1142
    %v1144 = vpop.f32.mrb[0].mxu0
    %v1145 = vpop.f32.mrb[0].mxu0
    %v1146 = vpop.f32.mrb[0].mxu0
    %1147 = vdwg.mxu0
    %1148 = vmatprep.subr.bf16.mxu0 0
    %1149 = vmatpush1.bf16.msra.mxu0 %v1004
    %1150 = vmatprep.subr.bf16.mxu0 0
    %1151 = vmatpush1.bf16.msra.mxu0 %v1005
    %1152 = vmatprep.subr.bf16.mxu0 0
    %1153 = vmatpush1.bf16.msra.mxu0 %v1006
    %1154 = vmatprep.subr.bf16.mxu0 0
    %1155 = vmatpush1.bf16.msra.mxu0 %v1007
    %1156 = vmatprep.subr.bf16.mxu0 0
    %1157 = vmatpush1.bf16.msra.mxu0 %v1008
    %1158 = vmatprep.subr.bf16.mxu0 0
    %1159 = vmatpush1.bf16.msra.mxu0 %v1009
    %1160 = vmatprep.subr.bf16.mxu0 0
    %1161 = vmatpush1.bf16.msra.mxu0 %v1010
    %1162 = vmatprep.subr.bf16.mxu0 0
    %1163 = vmatpush1.bf16.msra.mxu0 %v1011
    %1164 = vmatprep.subr.bf16.mxu0 0
    %1165 = vmatpush1.bf16.msra.mxu0 %v1012
    %1166 = vmatprep.subr.bf16.mxu0 0
    %1167 = vmatpush1.bf16.msra.mxu0 %v1013
    %1168 = vmatprep.subr.bf16.mxu0 0
    %1169 = vmatpush1.bf16.msra.mxu0 %v1014
    %1170 = vmatprep.subr.bf16.mxu0 0
    %1171 = vmatpush1.bf16.msra.mxu0 %v1015
    %1172 = vmatprep.subr.bf16.mxu0 0
    %1173 = vmatpush1.bf16.msra.mxu0 %v1016
    %1174 = vmatprep.subr.bf16.mxu0 0
    %1175 = vmatpush1.bf16.msra.mxu0 %v1017
    %1176 = vmatprep.subr.bf16.mxu0 0
    %1177 = vmatpush1.bf16.msra.mxu0 %v1018
    %1178 = vmatprep.subr.bf16.mxu0 0
    %1179 = vmatpush1.bf16.msra.mxu0 %v1019
    %1180 = vmatprep.mubr.bf16.mxu0 %v676
    %1181 = vmatmul.mubr.bf16.gmra.mrb[0].mxu0 %v675
    %v1182 = vpop.f32.mrb[0].mxu0
    %v1183 = vadd.f32 %v1143, %v1182
    %v1184 = vpop.f32.mrb[0].mxu0
    %v1185 = vpop.f32.mrb[0].mxu0
    %v1186 = vpop.f32.mrb[0].mxu0
    %1187 = vdwg.mxu0
    %1189 = vrot.lane.b32.xlu0 %v1183, 120
    %v1190 = vpop.permute.xlu0 %1189
    %1192 = vrot.lane.b32.xlu0 %v1183, 112
    %v1193 = vpop.permute.xlu0 %1192
    %v1195 = vrot.slane %v1183, 4
    %v1196 = vrot.slane %v1190, 4
    %v1197 = vrot.slane %v1193, 4
    %vm1201 = vcmask 60416
    %1202 = vst.msk [vmem:[#allocation3] sm:$0xf] %vm1201, %v1183
    %1203 = vst.msk [vmem:[#allocation3 + $0x4] sm:$0xf] %vm1201, %v1190
    %1204 = vst.msk [vmem:[#allocation3 + $0x8] sm:$0xf] %vm1201, %v1193
    %1205 = vst.msk [vmem:[#allocation3 + $0xc] sm:$0xf] %vm1201, %v1195
    %1206 = vst.msk [vmem:[#allocation3 + $0x10] sm:$0xf] %vm1201, %v1196
    %1207 = vst.msk [vmem:[#allocation3 + $0x14] sm:$0xf] %vm1201, %v1197
    %v1208 = vmax.f32 %v1183, %v1190
    %v1209 = vmax.f32 %v1208, %v1193
    %v1210 = vsub.f32 %v1183, %v1209
    %v1211 = vmul.f32 %v1210, 1.442695
    %v1212 = vpow.pop %v1211
    %1214 = vrot.lane.b32.xlu0 %v1209, 8
    %v1215 = vpop.permute.xlu0 %1214
    %v1217 = vsub.f32 %v1183, %v1215
    %v1218 = vmul.f32 %v1217, 1.442695
    %v1219 = vpow.pop %v1218
    %1220 = vrot.lane.b32.xlu0 %v1209, 16
    %v1221 = vpop.permute.xlu0 %1220
    %v1223 = vsub.f32 %v1183, %v1221
    %v1224 = vmul.f32 %v1223, 1.442695
    %v1225 = vpow.pop %v1224
    %1227 = vrot.lane.b32.xlu0 %v1219, 120
    %v1228 = vpop.permute.xlu0 %1227
    %v1230 = vadd.f32 %v1212, %v1228
    %1232 = vrot.lane.b32.xlu0 %v1225, 112
    %v1233 = vpop.permute.xlu0 %1232
    %v1235 = vadd.f32 %v1230, %v1233
    %v1236 = vrcp.pop %v1235
    %v1237 = vmul.f32 %v1212, %v1236
    %vm1238 = vcmask 64512
    %v1239 = vsel %vm1238, %v1237, -inf
    %1240 = vmax.xlane.f32.xlu0 %v1239
    %v1241 = vpop.xlane.xlu0 %1240
    %1243 = vrot.lane.b32.xlu0 %v1236, 8
    %v1244 = vpop.permute.xlu0 %1243
    %v1246 = vmul.f32 %v1219, %v1244
    %vm1247 = vcmask 130112
    %v1248 = vsel %vm1247, %v1246, -inf
    %1249 = vmax.xlane.f32.xlu0 %v1248
    %v1250 = vpop.xlane.xlu0 %1249
    %1251 = vrot.lane.b32.xlu0 %v1236, 16
    %v1252 = vpop.permute.xlu0 %1251
    %v1254 = vmul.f32 %v1225, %v1252
    %vm1255 = vcmask 195712
    %v1256 = vsel %vm1255, %v1254, -inf
    %1257 = vmax.xlane.f32.xlu0 %v1256
    %v1258 = vpop.xlane.xlu0 %1257
    %v1259 = vlaneseq
    %v1260 = vshrl.u32 %v1259, 7
    %vm1261 = vcmask 1043456
    %v1262 = vsel %vm1261, %v1241, -inf
    %v1263 = vrot.slane %v1262, 4
    %v1264 = vmax.f32 %v1262, %v1263
    %v1265 = vrot.slane %v1264, 2
    %v1266 = vmax.f32 %v1264, %v1265
    %v1267 = vrot.slane %v1266, 1
    %v1268 = vmax.f32 %v1266, %v1267
    %vm1269 = vcmp.eq.f32.partialorder %v1241, %v1268
    %v1270 = vsel %vm1269, %v1260, 4
    %v1271 = vsel %vm1261, %v1270, 2147483647
    %v1272 = vrot.slane %v1271, 4
    %vm1273 = vcmp.lt.s32.totalorder %v1271, %v1272
    %v1274 = vsel %vm1273, %v1271, %v1272
    %v1275 = vrot.slane %v1274, 2
    %vm1276 = vcmp.lt.s32.totalorder %v1274, %v1275
    %v1277 = vsel %vm1276, %v1274, %v1275
    %v1278 = vrot.slane %v1277, 1
    %vm1279 = vcmp.lt.s32.totalorder %v1277, %v1278
    %v1280 = vsel %vm1279, %v1277, %v1278
    %vm1281 = vcmp.eq.s32.totalorder %v1260, %v1280
    %v1282 = vsel %vm1281, 1, 0
    %v1283 = vcvt.s32.f32 %v1282
    %v1284 = vsel %vm1261, %v1250, -inf
    %v1285 = vrot.slane %v1284, 4
    %v1286 = vmax.f32 %v1284, %v1285
    %v1287 = vrot.slane %v1286, 2
    %v1288 = vmax.f32 %v1286, %v1287
    %v1289 = vrot.slane %v1288, 1
    %v1290 = vmax.f32 %v1288, %v1289
    %vm1291 = vcmp.eq.f32.partialorder %v1250, %v1290
    %v1292 = vsel %vm1291, %v1260, 4
    %v1293 = vsel %vm1261, %v1292, 2147483647
    %v1294 = vrot.slane %v1293, 4
    %vm1295 = vcmp.lt.s32.totalorder %v1293, %v1294
    %v1296 = vsel %vm1295, %v1293, %v1294
    %v1297 = vrot.slane %v1296, 2
    %vm1298 = vcmp.lt.s32.totalorder %v1296, %v1297
    %v1299 = vsel %vm1298, %v1296, %v1297
    %v1300 = vrot.slane %v1299, 1
    %vm1301 = vcmp.lt.s32.totalorder %v1299, %v1300
    %v1302 = vsel %vm1301, %v1299, %v1300
    %vm1303 = vcmp.eq.s32.totalorder %v1260, %v1302
    %v1304 = vsel %vm1303, 1, 0
    %v1305 = vcvt.s32.f32 %v1304
    %v1306 = vsel %vm1261, %v1258, -inf
    %v1307 = vrot.slane %v1306, 4
    %v1308 = vmax.f32 %v1306, %v1307
    %v1309 = vrot.slane %v1308, 2
    %v1310 = vmax.f32 %v1308, %v1309
    %v1311 = vrot.slane %v1310, 1
    %v1312 = vmax.f32 %v1310, %v1311
    %vm1313 = vcmp.eq.f32.partialorder %v1258, %v1312
    %v1314 = vsel %vm1313, %v1260, 4
    %v1315 = vsel %vm1261, %v1314, 2147483647
    %v1316 = vrot.slane %v1315, 4
    %vm1317 = vcmp.lt.s32.totalorder %v1315, %v1316
    %v1318 = vsel %vm1317, %v1315, %v1316
    %v1319 = vrot.slane %v1318, 2
    %vm1320 = vcmp.lt.s32.totalorder %v1318, %v1319
    %v1321 = vsel %vm1320, %v1318, %v1319
    %v1322 = vrot.slane %v1321, 1
    %vm1323 = vcmp.lt.s32.totalorder %v1321, %v1322
    %v1324 = vsel %vm1323, %v1321, %v1322
    %vm1325 = vcmp.eq.s32.totalorder %v1260, %v1324
    %v1326 = vsel %vm1325, 1, 0
    %v1327 = vcvt.s32.f32 %v1326
    %vm1328 = vcmask 1047556
    %v1329 = vsel %vm1328, %v1241, -inf
    %v1330 = vrot.slane %v1329, 4
    %v1331 = vmax.f32 %v1329, %v1330
    %v1332 = vrot.slane %v1331, 2
    %v1333 = vmax.f32 %v1331, %v1332
    %v1334 = vrot.slane %v1333, 1
    %v1335 = vmax.f32 %v1333, %v1334
    %vm1336 = vcmp.eq.f32.partialorder %v1241, %v1335
    %v1337 = vrot.slane %v1260, 4
    %v1338 = vsel %vm1336, %v1337, 4
    %vm1339 = vcmask 7172
    %v1340 = vsel %vm1339, %v1338, 2147483647
    %v1341 = vrot.slane %v1340, 4
    %vm1342 = vcmp.lt.s32.totalorder %v1340, %v1341
    %v1343 = vsel %vm1342, %v1340, %v1341
    %v1344 = vrot.slane %v1343, 2
    %vm1345 = vcmp.lt.s32.totalorder %v1343, %v1344
    %v1346 = vsel %vm1345, %v1343, %v1344
    %v1347 = vrot.slane %v1346, 1
    %vm1348 = vcmp.lt.s32.totalorder %v1346, %v1347
    %v1349 = vsel %vm1348, %v1346, %v1347
    %vm1350 = vcmp.eq.s32.totalorder %v1260, %v1349
    %v1351 = vsel %vm1350, 1, 0
    %v1352 = vcvt.s32.f32 %v1351
    %v1353 = vsel %vm1328, %v1250, -inf
    %v1354 = vrot.slane %v1353, 4
    %v1355 = vmax.f32 %v1353, %v1354
    %v1356 = vrot.slane %v1355, 2
    %v1357 = vmax.f32 %v1355, %v1356
    %v1358 = vrot.slane %v1357, 1
    %v1359 = vmax.f32 %v1357, %v1358
    %vm1360 = vcmp.eq.f32.partialorder %v1250, %v1359
    %v1361 = vsel %vm1360, %v1337, 4
    %v1362 = vsel %vm1339, %v1361, 2147483647
    %v1363 = vrot.slane %v1362, 4
    %vm1364 = vcmp.lt.s32.totalorder %v1362, %v1363
    %v1365 = vsel %vm1364, %v1362, %v1363
    %v1366 = vrot.slane %v1365, 2
    %vm1367 = vcmp.lt.s32.totalorder %v1365, %v1366
    %v1368 = vsel %vm1367, %v1365, %v1366
    %v1369 = vrot.slane %v1368, 1
    %vm1370 = vcmp.lt.s32.totalorder %v1368, %v1369
    %v1371 = vsel %vm1370, %v1368, %v1369
    %vm1372 = vcmp.eq.s32.totalorder %v1260, %v1371
    %v1373 = vsel %vm1372, 1, 0
    %v1374 = vcvt.s32.f32 %v1373
    %v1375 = vsel %vm1328, %v1258, -inf
    %v1376 = vrot.slane %v1375, 4
    %v1377 = vmax.f32 %v1375, %v1376
    %v1378 = vrot.slane %v1377, 2
    %v1379 = vmax.f32 %v1377, %v1378
    %v1380 = vrot.slane %v1379, 1
    %v1381 = vmax.f32 %v1379, %v1380
    %vm1382 = vcmp.eq.f32.partialorder %v1258, %v1381
    %v1383 = vsel %vm1382, %v1337, 4
    %v1384 = vsel %vm1339, %v1383, 2147483647
    %v1385 = vrot.slane %v1384, 4
    %vm1386 = vcmp.lt.s32.totalorder %v1384, %v1385
    %v1387 = vsel %vm1386, %v1384, %v1385
    %v1388 = vrot.slane %v1387, 2
    %vm1389 = vcmp.lt.s32.totalorder %v1387, %v1388
    %v1390 = vsel %vm1389, %v1387, %v1388
    %v1391 = vrot.slane %v1390, 1
    %vm1392 = vcmp.lt.s32.totalorder %v1390, %v1391
    %v1393 = vsel %vm1392, %v1390, %v1391
    %vm1394 = vcmp.eq.s32.totalorder %v1260, %v1393
    %v1395 = vsel %vm1394, 1, 0
    %v1396 = vcvt.s32.f32 %v1395
    %v1397 = vld [vmem:[%s0] sm:$0xf]
    %v1398 = vld [vmem:[%s0 + $0x4] sm:$0xf]
    %v1399 = vld [vmem:[%s0 + $0x8] sm:$0xf]
    %v1400 = vld [vmem:[%s0 + $0xc] sm:$0xf]
    %v1401 = vld [vmem:[%s0 + $0x10] sm:$0xf]
    %v1402 = vld [vmem:[%s0 + $0x14] sm:$0xf]
    %1404 = vset.pattern.permute.xlu0 0
    %1405 = vperm.xlu0 %1404, %v1283
    %v1406 = vpop.permute.xlu0 %1405
    %1409 = vset.pattern.permute.xlu0 0
    %1410 = vperm.xlu0 %1409, %v1305
    %v1411 = vpop.permute.xlu0 %1410
    %1414 = vset.pattern.permute.xlu0 0
    %1415 = vperm.xlu0 %1414, %v1327
    %v1416 = vpop.permute.xlu0 %1415
    %1419 = vset.pattern.permute.xlu0 0
    %1420 = vperm.xlu0 %1419, %v1352
    %v1421 = vpop.permute.xlu0 %1420
    %1424 = vset.pattern.permute.xlu0 0
    %1425 = vperm.xlu0 %1424, %v1374
    %v1426 = vpop.permute.xlu0 %1425
    %1429 = vset.pattern.permute.xlu0 0
    %1430 = vperm.xlu0 %1429, %v1396
    %v1431 = vpop.permute.xlu0 %1430
    %v1433 = vmul.f32 %v1406, %v1397
    %v1434 = vmul.f32 %v1411, %v1398
    %v1435 = vmul.f32 %v1416, %v1399
    %v1436 = vmul.f32 %v1421, %v1400
    %v1437 = vmul.f32 %v1426, %v1401
    %v1438 = vmul.f32 %v1431, %v1402
    %v1439 = vsel %vm29, %v1433, 0.0
    %v1440 = vrot.slane %v1439, 4
    %v1441 = vadd.f32 %v1439, %v1440
    %v1442 = vrot.slane %v1441, 2
    %v1443 = vadd.f32 %v1441, %v1442
    %v1444 = vrot.slane %v1443, 1
    %v1445 = vadd.f32 %v1443, %v1444
    %v1446 = vsel %vm29, %v1434, 0.0
    %v1447 = vrot.slane %v1446, 4
    %v1448 = vadd.f32 %v1446, %v1447
    %v1449 = vrot.slane %v1448, 2
    %v1450 = vadd.f32 %v1448, %v1449
    %v1451 = vrot.slane %v1450, 1
    %v1452 = vadd.f32 %v1450, %v1451
    %v1453 = vsel %vm29, %v1435, 0.0
    %v1454 = vrot.slane %v1453, 4
    %v1455 = vadd.f32 %v1453, %v1454
    %v1456 = vrot.slane %v1455, 2
    %v1457 = vadd.f32 %v1455, %v1456
    %v1458 = vrot.slane %v1457, 1
    %v1459 = vadd.f32 %v1457, %v1458
    %v1460 = vsel %vm29, %v1436, 0.0
    %v1461 = vrot.slane %v1460, 4
    %v1462 = vadd.f32 %v1460, %v1461
    %v1463 = vrot.slane %v1462, 2
    %v1464 = vadd.f32 %v1462, %v1463
    %v1465 = vrot.slane %v1464, 1
    %v1466 = vadd.f32 %v1464, %v1465
    %v1467 = vsel %vm29, %v1437, 0.0
    %v1468 = vrot.slane %v1467, 4
    %v1469 = vadd.f32 %v1467, %v1468
    %v1470 = vrot.slane %v1469, 2
    %v1471 = vadd.f32 %v1469, %v1470
    %v1472 = vrot.slane %v1471, 1
    %v1473 = vadd.f32 %v1471, %v1472
    %v1474 = vsel %vm29, %v1438, 0.0
    %v1475 = vrot.slane %v1474, 4
    %v1476 = vadd.f32 %v1474, %v1475
    %v1477 = vrot.slane %v1476, 2
    %v1478 = vadd.f32 %v1476, %v1477
    %v1479 = vrot.slane %v1478, 1
    %v1480 = vadd.f32 %v1478, %v1479
    %vm1487 = vcmask 1041409
    %v1488 = vsel %vm1487, %v1452, %v1445
    %vm1489 = vcmask 1042434
    %v1490 = vsel %vm1489, %v1459, %v1488
    %v1491 = vsel %vm1487, %v1473, %v1466
    %v1492 = vsel %vm1489, %v1480, %v1491
    %vm1495 = vcmask 518144
    %1496 = vst.msk [vmem:[%s7] sm:$0x7] %vm1495, %v1490
    %1497 = vst.msk [vmem:[%s7 + $0x4] sm:$0x7] %vm1495, %v1492
    %v1498 = vld [vmem:[%s1] sm:$0xf]
    %v1499 = vld [vmem:[%s1 + $0x4] sm:$0xf]
    %v1500 = vld [vmem:[%s1 + $0x8] sm:$0xf]
    %v1501 = vld [vmem:[%s1 + $0xc] sm:$0xf]
    %v1502 = vld [vmem:[%s1 + $0x10] sm:$0xf]
    %v1503 = vld [vmem:[%s1 + $0x14] sm:$0xf]
    %v1504 = vmul.f32 %v1406, %v1498
    %v1505 = vmul.f32 %v1411, %v1499
    %v1506 = vmul.f32 %v1416, %v1500
    %v1507 = vmul.f32 %v1421, %v1501
    %v1508 = vmul.f32 %v1426, %v1502
    %v1509 = vmul.f32 %v1431, %v1503
    %vm1510 = vcmask 19456
    %v1511 = vsel %vm1510, %v1504, 0.0
    %v1512 = vrot.slane %v1511, 4
    %v1513 = vadd.f32 %v1511, %v1512
    %v1514 = vrot.slane %v1513, 2
    %v1515 = vadd.f32 %v1513, %v1514
    %v1516 = vrot.slane %v1515, 1
    %v1517 = vadd.f32 %v1515, %v1516
    %v1518 = vsel %vm1510, %v1505, 0.0
    %v1519 = vrot.slane %v1518, 4
    %v1520 = vadd.f32 %v1518, %v1519
    %v1521 = vrot.slane %v1520, 2
    %v1522 = vadd.f32 %v1520, %v1521
    %v1523 = vrot.slane %v1522, 1
    %v1524 = vadd.f32 %v1522, %v1523
    %v1525 = vsel %vm1510, %v1506, 0.0
    %v1526 = vrot.slane %v1525, 4
    %v1527 = vadd.f32 %v1525, %v1526
    %v1528 = vrot.slane %v1527, 2
    %v1529 = vadd.f32 %v1527, %v1528
    %v1530 = vrot.slane %v1529, 1
    %v1531 = vadd.f32 %v1529, %v1530
    %v1532 = vsel %vm1510, %v1507, 0.0
    %v1533 = vrot.slane %v1532, 4
    %v1534 = vadd.f32 %v1532, %v1533
    %v1535 = vrot.slane %v1534, 2
    %v1536 = vadd.f32 %v1534, %v1535
    %v1537 = vrot.slane %v1536, 1
    %v1538 = vadd.f32 %v1536, %v1537
    %v1539 = vsel %vm1510, %v1508, 0.0
    %v1540 = vrot.slane %v1539, 4
    %v1541 = vadd.f32 %v1539, %v1540
    %v1542 = vrot.slane %v1541, 2
    %v1543 = vadd.f32 %v1541, %v1542
    %v1544 = vrot.slane %v1543, 1
    %v1545 = vadd.f32 %v1543, %v1544
    %v1546 = vsel %vm1510, %v1509, 0.0
    %v1547 = vrot.slane %v1546, 4
    %v1548 = vadd.f32 %v1546, %v1547
    %v1549 = vrot.slane %v1548, 2
    %v1550 = vadd.f32 %v1548, %v1549
    %v1551 = vrot.slane %v1550, 1
    %v1552 = vadd.f32 %v1550, %v1551
    %v1559 = vsel %vm1487, %v1524, %v1517
    %v1560 = vsel %vm1489, %v1531, %v1559
    %v1561 = vsel %vm1487, %v1545, %v1538
    %v1562 = vsel %vm1489, %v1552, %v1561
    %vm1565 = vcmask 18432
    %1566 = vst.msk [vmem:[%s8] sm:$0x7] %vm1565, %v1560
    %1567 = vst.msk [vmem:[%s8 + $0x4] sm:$0x7] %vm1565, %v1562
    // Predicated region
    $region26: #{view_selector_forward.1} parent=1 // pred_check
      _
    $region27: #{view_selector_forward.1} parent=1 // pred_check_branch
      %1569 = sbr.rel (0) target = $region29
    $region28: #{view_selector_forward.1} parent=1 // pred_region
      %s1571 = ssub.s32 384, 384
      %1572 = vsyncadd [#allocation4], %s1571
      %s1573 = sshll.u32 [#allocation3], 4
      %s1574 = int_to_ptr.vmem [resolvable:$true] %s1573
      %1579 = dma.vmem_to_hbm [thread:$0]  %s1574, 384, %s6, [#allocation4], 64, 64, 4
    $region29: #{view_selector_forward.1} parent=1 // pred_fallthru
      _
    // Predicated region
    $region30: #{view_selector_forward.1} parent=1 // pred_check
      _
    $region31: #{view_selector_forward.1} parent=1 // pred_check_branch
      %1581 = sbr.rel (0) target = $region33
    $region32: #{view_selector_forward.1} parent=1 // pred_region
      _
    $region33: #{view_selector_forward.1} parent=1 // pred_fallthru
      _
    // Predicated region
    $region34: #{view_selector_forward.1} parent=1 // pred_check
      _
    $region35: #{view_selector_forward.1} parent=1 // pred_check_branch
      %1583 = sbr.rel (0) target = $region37
    $region36: #{view_selector_forward.1} parent=1 // pred_region
      _
    $region37: #{view_selector_forward.1} parent=1 // pred_fallthru
      _
    // Predicated region
    $region38: #{view_selector_forward.1} parent=1 // pred_check
      _
    $region39: #{view_selector_forward.1} parent=1 // pred_check_branch
      %1585 = sbr.rel (0) target = $region41
    $region40: #{view_selector_forward.1} parent=1 // pred_region
      %1586 = dma.done [#allocation4], 384
    $region41: #{view_selector_forward.1} parent=1 // pred_fallthru
      _
    // Predicated region
    $region42: #{view_selector_forward.1} parent=1 // pred_check
      _
    $region43: #{view_selector_forward.1} parent=1 // pred_check_branch
      %1588 = sbr.rel (0) target = $region45
    $region44: #{view_selector_forward.1} parent=1 // pred_region
      _
    $region45: #{view_selector_forward.1} parent=1 // pred_fallthru
      _
    // Predicated region
    $region46: #{view_selector_forward.1} parent=1 // pred_check
      _
    $region47: #{view_selector_forward.1} parent=1 // pred_check_branch
      %1590 = sbr.rel (0) target = $region49
    $region48: #{view_selector_forward.1} parent=1 // pred_region
      _
    $region49: #{view_selector_forward.1} parent=1 // pred_fallthru
      _
    %1591 = vsyncpa [#allocation4], 1

</llo_original>
